<compile_context>
chip_gen: v5e
topology: v5e:2x2
jax: 0.10.0
libtpu: 0.0.40
codegen_flags: <defaults>
</compile_context>

<pallas_src>
import functools

import jax
import jax.numpy as jnp
import numpy as np
from jax import lax
from jax.experimental import pallas as pl
from jax.experimental.pallas import tpu as pltpu


def _round_up(x, m):
    return (x + m - 1) // m * m


def _pick_tile_do(Do, Ho, KB, itemsize, target_rows=256, max_lhs_bytes=8 << 20):
    """Largest divisor of Do whose im2col LHS fits the VMEM budget (stops once
    M = TDo*Ho reaches `target_rows`). Keeps the LHS well under the v7x 64 MiB VMEM."""
    best = 1
    for t in range(1, Do + 1):
        if Do % t:
            continue
        if t * Ho * KB * itemsize > max_lhs_bytes:
            break
        best = t
        if t * Ho >= target_rows:
            break
    return best


def _band_weights(w, W, Wo, sw, wocp):
    """(Cout, Cin, kd, kh, kw) -> banded (kd*kh*W*Cin, wocp) matrix (zero-padded cols).

    B[((id*kh+ih)*W + w_in)*Cin + c, wo*Cout + co] = w[co, c, id, ih, w_in - wo*sw]
    (zero outside the kw band), so the W taps and the W stride fold into the matmul
    contraction -- no lane gathers or strided W slices inside the kernel.
    # TODO(synk): for non-toy W, tile the Wo axis (block-banded GEMM) so MXU FLOPs and
    # weight VMEM stop scaling with W/kw (matters most on v5e's MXU and v7x's VMEM).
    """
    Cout, Cin, kd, kh, kw = w.shape
    sel = np.zeros((kw, W, Wo), np.float32)
    for iw in range(kw):
        for wo in range(Wo):
            sel[iw, wo * sw + iw, wo] = 1.0
    w_t = jnp.transpose(w, (2, 3, 4, 1, 0))                      # (kd, kh, kw, Cin, Cout)
    band = jnp.einsum('xwv,dhxco->dhwcvo', jnp.asarray(sel), w_t)
    band = band.reshape(kd * kh * W * Cin, Wo * Cout)
    return jnp.pad(band, ((0, 0), (0, wocp - Wo * Cout)))


def _hpool_select(tile_do, Ho, Hp):
    """(3, TDo*Hp, TDo*Ho) 0/1 row selection: R[j] picks conv row 2*hp+j within each
    depth group, so max_j(R[j] @ conv) is the H maxpool (window 3, stride 2)."""
    r = np.zeros((3, tile_do * Hp, tile_do * Ho), np.float32)
    for j in range(3):
        for d in range(tile_do):
            for hp in range(Hp):
                r[j, d * Hp + hp, d * Ho + 2 * hp + j] = 1.0
    return jnp.asarray(r)


def _wpool_select(Wo, Wp, Cout, wocp, wpcp):
    """(wocp, 3*wpcp) 0/1 column selection: group k picks conv column group 2*wp+k, so
    max_k over the three lane-aligned 128-wide groups of (hmax @ S) is the W maxpool
    (window 3, stride 2) fused with the even-column compaction."""
    s = np.zeros((wocp, 3 * wpcp), np.float32)
    for k in range(3):
        for wp in range(Wp):
            w_in = 2 * wp + k
            for c in range(Cout):
                s[w_in * Cout + c, k * wpcp + wp * Cout + c] = 1.0
    return jnp.asarray(s)


def _conv_pool_relu_stats_kernel(x_ref, w_ref, r_ref, s_ref, b_ref,
                                 y_ref, stats_ref, *,
                                 ksize, stride, conv_spatial, pool_spatial,
                                 tile_do, wpcp):
    """One batch element: Conv3d (implicit GEMM, Do-tiled) + MaxPool3d(1,3,3)/(1,2,2)
    via selection matmuls + bias + ReLU, plus per-lane BatchNorm partial sums.

      x_ref:     (1, D, H, W*Cin)        input, W/Cin packed in lanes
      w_ref:     (kd*kh*W*Cin, WoCp)     banded conv weights (128-padded cols)
      r_ref:     (3, TDo*Hp, TDo*Ho)     H-pool row-selection matrices
      s_ref:     (WoCp, 3*WpCp)          W-pool column-selection matrix
      b_ref:     (1, WpCp)               conv bias tiled over Wp (128-padded)
      y_ref:     (1, Do*Hp, WpCp)        pooled+ReLU output (lane-dense)
      stats_ref: (1, 2, WpCp)            [sum, sum_sq] per (wp, cout) lane
    """
    kd, kh, _ = ksize
    sd, sh, _ = stride
    Do, Ho, _ = conv_spatial
    Hp, _ = pool_spatial
    wcin = x_ref.shape[-1]
    m1 = tile_do * Hp
    n_tiles = Do // tile_do

    # Hoisted loads / broadcasts (outside the unrolled tile loop: no per-iter rebroadcast).
    band = w_ref[...]
    r0, r1, r2 = r_ref[0], r_ref[1], r_ref[2]
    smat = s_ref[...]
    bias = jnp.broadcast_to(b_ref[...], (m1, wpcp))

    # im2col row-slab cache: slab(dd, ih) = H-strided rows of input depth plane dd at
    # vertical tap ih -> (Ho, W*Cin).  Reused by every depth-output slice whose window
    # covers dd (sd < kd) instead of re-slicing kd*kh times per output depth.
    slabs = {}

    def get_slab(dd, ih):
        key = (dd, ih)
        if key not in slabs:
            if sh == 1:
                slabs[key] = x_ref[0, dd, ih:ih + Ho, :]
            else:
                # stride>1 along H: pad + pair-reshape row subsampling (no strided loads).
                span = (Ho - 1) * sh + 1
                full = x_ref[0, dd, ih:ih + span, :]
                full = jnp.concatenate([full, full[:sh - 1]], axis=0)
                slabs[key] = full.reshape(Ho, sh, wcin)[:, 0]
        return slabs[key]

    s_acc = jnp.zeros((m1, wpcp), jnp.float32)
    ss_acc = jnp.zeros((m1, wpcp), jnp.float32)

    for t in range(n_tiles):
        # ---- implicit-GEMM LHS for this Do tile: (TDo*Ho, kd*kh*W*Cin) ----
        row_blocks = []
        for d in range(tile_do):
            taps = []
            for id_ in range(kd):
                dd = (t * tile_do + d) * sd + id_
                for ih in range(kh):
                    taps.append(get_slab(dd, ih))
            row_blocks.append(jnp.concatenate(taps, axis=1))
        lhs = jnp.concatenate(row_blocks, axis=0)

        # ---- Conv3d: ONE MXU matmul covering all TDo depth slices of the tile ----
        conv = jnp.dot(lhs, band, preferred_element_type=jnp.float32)    # (TDo*Ho, WoCp)

        # ---- MaxPool H (window 3, stride 2): row-selection matmuls + max ----
        hmax = jnp.maximum(
            jnp.maximum(jnp.dot(r0, conv, preferred_element_type=jnp.float32),
                        jnp.dot(r1, conv, preferred_element_type=jnp.float32)),
            jnp.dot(r2, conv, preferred_element_type=jnp.float32))       # (TDo*Hp, WoCp)

        # ---- MaxPool W (window 3, stride 2) + even-column compaction: one matmul ----
        ws = jnp.dot(hmax, smat, preferred_element_type=jnp.float32)     # (TDo*Hp, 3*WpCp)
        pooled = jnp.maximum(jnp.maximum(ws[:, :wpcp], ws[:, wpcp:2 * wpcp]),
                             ws[:, 2 * wpcp:])                           # (TDo*Hp, WpCp)

        # ---- bias (post-pool: max(x+b) == max(x)+b per channel) + ReLU ----
        act = jnp.maximum(pooled + bias, 0.0)

        # ---- streaming store + lane-dense BatchNorm partial sums (VPU adds) ----
        y_ref[0, t * m1:(t + 1) * m1, :] = act
        s_acc = s_acc + act
        ss_acc = ss_acc + act * act

    # Single cross-sublane fold per invocation.
    stats_ref[0] = jnp.concatenate(
        [jnp.sum(s_acc, axis=0, keepdims=True),
         jnp.sum(ss_acc, axis=0, keepdims=True)], axis=0)                # (2, WpCp)


def group_conv(x, w, b, gamma, beta, kernel_size, stride, eps=1e-5,
               compute_dtype=jnp.float32):
    """x: (N, Cin, D, H, W) NCDHW; w: (Cout, Cin, kd, kh, kw).  Returns NCDHW output of
    Conv3d -> MaxPool3d((1,3,3),(1,2,2)) -> ReLU -> BatchNorm3d (training-mode stats).

    compute_dtype=jnp.bfloat16 runs the conv GEMM with bf16 operands (f32 accumulation)
    on bf16-native MXUs (v6e/v7x) when the accuracy budget allows; default is f32.
    """
    N, Cin, D, H, W = x.shape
    Cout = w.shape[0]
    kd, kh, kw = kernel_size
    sd, sh, sw = stride
    Do = (D - kd) // sd + 1
    Ho = (H - kh) // sh + 1
    Wo = (W - kw) // sw + 1
    assert Do >= 1 and Ho >= 3 and Wo >= 3, "spatial dims too small for (1,3,3) pooling"
    Hp = (Ho - 3) // 2 + 1
    Wp = (Wo - 3) // 2 + 1
    # VALID 3/2 pooling never reads past the conv output (guards future window changes).
    assert 2 * (Hp - 1) + 2 <= Ho - 1 and 2 * (Wp - 1) + 2 <= Wo - 1

    KB = kd * kh * W * Cin
    WoCp = _round_up(Wo * Cout, 128)          # conv/pool intermediate lane width
    WpCp = _round_up(Wp * Cout, 128)          # output lane width (unmasked vst stores)
    TDo = _pick_tile_do(Do, Ho, KB, jnp.dtype(compute_dtype).itemsize)

    # channels-last with W and Cin packed into the lane dimension.
    x2 = jnp.transpose(x, (0, 2, 3, 4, 1)).reshape(N, D, H, W * Cin).astype(compute_dtype)
    band = _band_weights(w, W, Wo, sw, WoCp).astype(compute_dtype)
    rsel = _hpool_select(TDo, Ho, Hp)
    ssel = _wpool_select(Wo, Wp, Cout, WoCp, WpCp)
    bias_row = jnp.pad(jnp.tile(b, Wp), (0, WpCp - Wp * Cout)).reshape(1, WpCp)

    kernel = functools.partial(
        _conv_pool_relu_stats_kernel,
        ksize=(kd, kh, kw), stride=(sd, sh, sw),
        conv_spatial=(Do, Ho, Wo), pool_spatial=(Hp, Wp),
        tile_do=TDo, wpcp=WpCp)

    # TODO(synk): for large D, add a Do-tile grid axis ("arbitrary") with a windowed
    # depth BlockSpec / manual DMA so the input block is bounded and DMA pipelines with
    # compute; at these shapes the per-batch volume is only a few tens of KB.
    y, stats = pl.pallas_call(
        kernel,
        out_shape=(jax.ShapeDtypeStruct((N, Do * Hp, WpCp), jnp.float32),
                   jax.ShapeDtypeStruct((N, 2, WpCp), jnp.float32)),
        grid=(N,),
        in_specs=[
            pl.BlockSpec((1, D, H, W * Cin), lambda n: (n, 0, 0, 0)),
            pl.BlockSpec((KB, WoCp), lambda n: (0, 0)),
            pl.BlockSpec((3, TDo * Hp, TDo * Ho), lambda n: (0, 0, 0)),
            pl.BlockSpec((WoCp, 3 * WpCp), lambda n: (0, 0)),
            pl.BlockSpec((1, WpCp), lambda n: (0, 0)),
        ],
        out_specs=(
            pl.BlockSpec((1, Do * Hp, WpCp), lambda n: (n, 0, 0)),
            pl.BlockSpec((1, 2, WpCp), lambda n: (n, 0, 0)),
        ),
        compiler_params=pltpu.CompilerParams(
            dimension_semantics=("parallel",),
            vmem_limit_bytes=32 * 1024 * 1024),
    )(x2, band, rsel, ssel, bias_row)

    # ---- BatchNorm3d (training-mode forward): batch mean / biased variance ----
    valid = Wp * Cout
    count = N * Do * Hp * Wp
    folded = stats[:, :, :valid].reshape(N, 2, Wp, Cout).sum(axis=(0, 2))   # (2, Cout)
    mean = folded[0] / count
    var = jnp.maximum(folded[1] / count - mean * mean, 0.0)
    # TODO(synk): E[x^2]-mean^2 can cancel for large-magnitude activations; use a
    # shifted / two-pass variance if inputs are not roughly unit scale.
    inv = gamma * lax.rsqrt(var + eps)
    shift = beta - mean * inv

    # Scale/shift applied with plain jnp so XLA fuses it with the slice / reshape /
    # transpose back to NCDHW (no second pallas_call, no extra HBM round trip of y).
    z = y[:, :, :valid].reshape(N, Do, Hp, Wp, Cout) * inv + shift
    return jnp.transpose(z, (0, 4, 1, 2, 3))


def _reference(x, w, b, gamma, beta, stride, eps):
    conv = lax.conv_general_dilated(
        x, w, window_strides=stride, padding="VALID",
        dimension_numbers=("NCDHW", "OIDHW", "NCDHW"))
    conv = conv + b[None, :, None, None, None]
    pooled = lax.reduce_window(conv, -jnp.inf, lax.max,
                               (1, 1, 1, 3, 3), (1, 1, 1, 2, 2), "VALID")
    r = jnp.maximum(pooled, 0.0)
    mean = r.mean(axis=(0, 2, 3, 4), keepdims=True)
    var = ((r - mean) ** 2).mean(axis=(0, 2, 3, 4), keepdims=True)
    return ((r - mean) * lax.rsqrt(var + eps) * gamma[None, :, None, None, None]
            + beta[None, :, None, None, None])


def _run_case(key, N, Cin, Cout, D, H, W, ksize, stride, eps=1e-5):
    kx, kw_, kb, kg, kbt = jax.random.split(key, 5)
    x = jax.random.normal(kx, (N, Cin, D, H, W), jnp.float32)
    w = 0.1 * jax.random.normal(kw_, (Cout, Cin) + ksize, jnp.float32)
    b = 0.1 * jax.random.normal(kb, (Cout,), jnp.float32)
    gamma = 1.0 + 0.1 * jax.random.normal(kg, (Cout,), jnp.float32)
    beta = 0.1 * jax.random.normal(kbt, (Cout,), jnp.float32)

    out = group_conv(x, w, b, gamma, beta, ksize, stride, eps)
    out = jax.block_until_ready(out)
    ref = _reference(x, w, b, gamma, beta, stride, eps)
    assert out.shape == ref.shape, (out.shape, ref.shape)
    if not np.allclose(np.asarray(out), np.asarray(ref), rtol=1e-4, atol=1e-4):
        err = float(np.max(np.abs(np.asarray(out) - np.asarray(ref))))
        raise SystemExit(f"mismatch (stride={stride}): max abs err {err:.3e}")


if __name__ == "__main__":
    key = jax.random.PRNGKey(0)
    k1, k2 = jax.random.split(key)
    # stride-1 case (matches the original toy test shapes)
    _run_case(k1, N=2, Cin=4, Cout=8, D=6, H=16, W=16,
              ksize=(3, 3, 3), stride=(1, 1, 1))
    # stride-2 case (validates the strided conv / H-subsample path)
    _run_case(k2, N=2, Cin=4, Cout=8, D=9, H=21, W=21,
              ksize=(3, 3, 3), stride=(2, 2, 2))
    print("KERNEL_OK")
</pallas_src>

<mosaic_0001>
module attributes {stable_mosaic.version = 11 : i64} {
  func.func @_conv_pool_relu_stats_kernel(%arg0: i32, %arg1: memref<1x6x16x64xf32, #tpu.memory_space<vmem>>, %arg2: memref<576x128xf32, #tpu.memory_space<vmem>>, %arg3: memref<3x24x56xf32, #tpu.memory_space<vmem>>, %arg4: memref<128x384xf32, #tpu.memory_space<vmem>>, %arg5: memref<1x128xf32, #tpu.memory_space<vmem>>, %arg6: memref<1x24x128xf32, #tpu.memory_space<vmem>>, %arg7: memref<1x2x128xf32, #tpu.memory_space<vmem>>) attributes {dimension_semantics = [#tpu.dimension_semantics<parallel>], iteration_bounds = array<i64: 2>, scalar_prefetch = 0 : i64, scratch_operands = 0 : i64, tpu.core_type = #tpu.core_type<tc>, window_params = [{transform_indices = @transform_0, window_bounds = array<i64: 1, 6, 16, 64>}, {pipeline_mode = #tpu.pipeline_mode<synchronous>, transform_indices = @transform_1, window_bounds = array<i64: 576, 128>}, {pipeline_mode = #tpu.pipeline_mode<synchronous>, transform_indices = @transform_2, window_bounds = array<i64: 3, 24, 56>}, {pipeline_mode = #tpu.pipeline_mode<synchronous>, transform_indices = @transform_3, window_bounds = array<i64: 128, 384>}, {pipeline_mode = #tpu.pipeline_mode<synchronous>, transform_indices = @transform_4, window_bounds = array<i64: 1, 128>}, {transform_indices = @transform_5, window_bounds = array<i64: 1, 24, 128>}, {transform_indices = @transform_6, window_bounds = array<i64: 1, 2, 128>}]} {
    %c0 = arith.constant 0 : index
    %c0_0 = arith.constant 0 : index
    %0 = vector.load %arg2[%c0, %c0_0] : memref<576x128xf32, #tpu.memory_space<vmem>>, vector<576x128xf32>
    %c0_1 = arith.constant 0 : index
    %c0_2 = arith.constant 0 : index
    %c0_3 = arith.constant 0 : index
    %1 = vector.load %arg3[%c0_1, %c0_2, %c0_3] : memref<3x24x56xf32, #tpu.memory_space<vmem>>, vector<1x24x56xf32>
    %2 = vector.shape_cast %1 : vector<1x24x56xf32> to vector<24x56xf32>
    %c1 = arith.constant 1 : index
    %c0_4 = arith.constant 0 : index
    %c0_5 = arith.constant 0 : index
    %3 = vector.load %arg3[%c1, %c0_4, %c0_5] : memref<3x24x56xf32, #tpu.memory_space<vmem>>, vector<1x24x56xf32>
    %4 = vector.shape_cast %3 : vector<1x24x56xf32> to vector<24x56xf32>
    %c2 = arith.constant 2 : index
    %c0_6 = arith.constant 0 : index
    %c0_7 = arith.constant 0 : index
    %5 = vector.load %arg3[%c2, %c0_6, %c0_7] : memref<3x24x56xf32, #tpu.memory_space<vmem>>, vector<1x24x56xf32>
    %6 = vector.shape_cast %5 : vector<1x24x56xf32> to vector<24x56xf32>
    %c0_8 = arith.constant 0 : index
    %c0_9 = arith.constant 0 : index
    %7 = vector.load %arg4[%c0_8, %c0_9] : memref<128x384xf32, #tpu.memory_space<vmem>>, vector<128x384xf32>
    %c0_10 = arith.constant 0 : index
    %c0_11 = arith.constant 0 : index
    %8 = vector.load %arg5[%c0_10, %c0_11] : memref<1x128xf32, #tpu.memory_space<vmem>>, vector<1x128xf32>
    %9 = vector.shape_cast %8 : vector<1x128xf32> to vector<1x128xf32>
    %10 = vector.broadcast %9 : vector<1x128xf32> to vector<24x128xf32>
    %cst = arith.constant 0.000000e+00 : f32
    %11 = vector.broadcast %cst : f32 to vector<24x128xf32>
    %cst_12 = arith.constant 0.000000e+00 : f32
    %12 = vector.broadcast %cst_12 : f32 to vector<24x128xf32>
    %c0_13 = arith.constant 0 : index
    %c0_14 = arith.constant 0 : index
    %c0_15 = arith.constant 0 : index
    %c0_16 = arith.constant 0 : index
    %13 = vector.load %arg1[%c0_13, %c0_14, %c0_15, %c0_16] : memref<1x6x16x64xf32, #tpu.memory_space<vmem>>, vector<1x1x14x64xf32>
    %14 = vector.shape_cast %13 : vector<1x1x14x64xf32> to vector<14x64xf32>
    %c0_17 = arith.constant 0 : index
    %c0_18 = arith.constant 0 : index
    %c1_19 = arith.constant 1 : index
    %c0_20 = arith.constant 0 : index
    %15 = vector.load %arg1[%c0_17, %c0_18, %c1_19, %c0_20] : memref<1x6x16x64xf32, #tpu.memory_space<vmem>>, vector<1x1x14x64xf32>
    %16 = vector.shape_cast %15 : vector<1x1x14x64xf32> to vector<14x64xf32>
    %c0_21 = arith.constant 0 : index
    %c0_22 = arith.constant 0 : index
    %c2_23 = arith.constant 2 : index
    %c0_24 = arith.constant 0 : index
    %17 = vector.load %arg1[%c0_21, %c0_22, %c2_23, %c0_24] : memref<1x6x16x64xf32, #tpu.memory_space<vmem>>, vector<1x1x14x64xf32>
    %18 = vector.shape_cast %17 : vector<1x1x14x64xf32> to vector<14x64xf32>
    %c0_25 = arith.constant 0 : index
    %c1_26 = arith.constant 1 : index
    %c0_27 = arith.constant 0 : index
    %c0_28 = arith.constant 0 : index
    %19 = vector.load %arg1[%c0_25, %c1_26, %c0_27, %c0_28] : memref<1x6x16x64xf32, #tpu.memory_space<vmem>>, vector<1x1x14x64xf32>
    %20 = vector.shape_cast %19 : vector<1x1x14x64xf32> to vector<14x64xf32>
    %c0_29 = arith.constant 0 : index
    %c1_30 = arith.constant 1 : index
    %c1_31 = arith.constant 1 : index
    %c0_32 = arith.constant 0 : index
    %21 = vector.load %arg1[%c0_29, %c1_30, %c1_31, %c0_32] : memref<1x6x16x64xf32, #tpu.memory_space<vmem>>, vector<1x1x14x64xf32>
    %22 = vector.shape_cast %21 : vector<1x1x14x64xf32> to vector<14x64xf32>
    %c0_33 = arith.constant 0 : index
    %c1_34 = arith.constant 1 : index
    %c2_35 = arith.constant 2 : index
    %c0_36 = arith.constant 0 : index
    %23 = vector.load %arg1[%c0_33, %c1_34, %c2_35, %c0_36] : memref<1x6x16x64xf32, #tpu.memory_space<vmem>>, vector<1x1x14x64xf32>
    %24 = vector.shape_cast %23 : vector<1x1x14x64xf32> to vector<14x64xf32>
    %c0_37 = arith.constant 0 : index
    %c2_38 = arith.constant 2 : index
    %c0_39 = arith.constant 0 : index
    %c0_40 = arith.constant 0 : index
    %25 = vector.load %arg1[%c0_37, %c2_38, %c0_39, %c0_40] : memref<1x6x16x64xf32, #tpu.memory_space<vmem>>, vector<1x1x14x64xf32>
    %26 = vector.shape_cast %25 : vector<1x1x14x64xf32> to vector<14x64xf32>
    %c0_41 = arith.constant 0 : index
    %c2_42 = arith.constant 2 : index
    %c1_43 = arith.constant 1 : index
    %c0_44 = arith.constant 0 : index
    %27 = vector.load %arg1[%c0_41, %c2_42, %c1_43, %c0_44] : memref<1x6x16x64xf32, #tpu.memory_space<vmem>>, vector<1x1x14x64xf32>
    %28 = vector.shape_cast %27 : vector<1x1x14x64xf32> to vector<14x64xf32>
    %c0_45 = arith.constant 0 : index
    %c2_46 = arith.constant 2 : index
    %c2_47 = arith.constant 2 : index
    %c0_48 = arith.constant 0 : index
    %29 = vector.load %arg1[%c0_45, %c2_46, %c2_47, %c0_48] : memref<1x6x16x64xf32, #tpu.memory_space<vmem>>, vector<1x1x14x64xf32>
    %30 = vector.shape_cast %29 : vector<1x1x14x64xf32> to vector<14x64xf32>
    %31 = tpu.concatenate %14, %16, %18, %20, %22, %24, %26, %28, %30 in 1 : vector<14x64xf32>, vector<14x64xf32>, vector<14x64xf32>, vector<14x64xf32>, vector<14x64xf32>, vector<14x64xf32>, vector<14x64xf32>, vector<14x64xf32>, vector<14x64xf32> -> vector<14x576xf32>
    %c0_49 = arith.constant 0 : index
    %c3 = arith.constant 3 : index
    %c0_50 = arith.constant 0 : index
    %c0_51 = arith.constant 0 : index
    %32 = vector.load %arg1[%c0_49, %c3, %c0_50, %c0_51] : memref<1x6x16x64xf32, #tpu.memory_space<vmem>>, vector<1x1x14x64xf32>
    %33 = vector.shape_cast %32 : vector<1x1x14x64xf32> to vector<14x64xf32>
    %c0_52 = arith.constant 0 : index
    %c3_53 = arith.constant 3 : index
    %c1_54 = arith.constant 1 : index
    %c0_55 = arith.constant 0 : index
    %34 = vector.load %arg1[%c0_52, %c3_53, %c1_54, %c0_55] : memref<1x6x16x64xf32, #tpu.memory_space<vmem>>, vector<1x1x14x64xf32>
    %35 = vector.shape_cast %34 : vector<1x1x14x64xf32> to vector<14x64xf32>
    %c0_56 = arith.constant 0 : index
    %c3_57 = arith.constant 3 : index
    %c2_58 = arith.constant 2 : index
    %c0_59 = arith.constant 0 : index
    %36 = vector.load %arg1[%c0_56, %c3_57, %c2_58, %c0_59] : memref<1x6x16x64xf32, #tpu.memory_space<vmem>>, vector<1x1x14x64xf32>
    %37 = vector.shape_cast %36 : vector<1x1x14x64xf32> to vector<14x64xf32>
    %38 = tpu.concatenate %20, %22, %24, %26, %28, %30, %33, %35, %37 in 1 : vector<14x64xf32>, vector<14x64xf32>, vector<14x64xf32>, vector<14x64xf32>, vector<14x64xf32>, vector<14x64xf32>, vector<14x64xf32>, vector<14x64xf32>, vector<14x64xf32> -> vector<14x576xf32>
    %c0_60 = arith.constant 0 : index
    %c4 = arith.constant 4 : index
    %c0_61 = arith.constant 0 : index
    %c0_62 = arith.constant 0 : index
    %39 = vector.load %arg1[%c0_60, %c4, %c0_61, %c0_62] : memref<1x6x16x64xf32, #tpu.memory_space<vmem>>, vector<1x1x14x64xf32>
    %40 = vector.shape_cast %39 : vector<1x1x14x64xf32> to vector<14x64xf32>
    %c0_63 = arith.constant 0 : index
    %c4_64 = arith.constant 4 : index
    %c1_65 = arith.constant 1 : index
    %c0_66 = arith.constant 0 : index
    %41 = vector.load %arg1[%c0_63, %c4_64, %c1_65, %c0_66] : memref<1x6x16x64xf32, #tpu.memory_space<vmem>>, vector<1x1x14x64xf32>
    %42 = vector.shape_cast %41 : vector<1x1x14x64xf32> to vector<14x64xf32>
    %c0_67 = arith.constant 0 : index
    %c4_68 = arith.constant 4 : index
    %c2_69 = arith.constant 2 : index
    %c0_70 = arith.constant 0 : index
    %43 = vector.load %arg1[%c0_67, %c4_68, %c2_69, %c0_70] : memref<1x6x16x64xf32, #tpu.memory_space<vmem>>, vector<1x1x14x64xf32>
    %44 = vector.shape_cast %43 : vector<1x1x14x64xf32> to vector<14x64xf32>
    %45 = tpu.concatenate %26, %28, %30, %33, %35, %37, %40, %42, %44 in 1 : vector<14x64xf32>, vector<14x64xf32>, vector<14x64xf32>, vector<14x64xf32>, vector<14x64xf32>, vector<14x64xf32>, vector<14x64xf32>, vector<14x64xf32>, vector<14x64xf32> -> vector<14x576xf32>
    %c0_71 = arith.constant 0 : index
    %c5 = arith.constant 5 : index
    %c0_72 = arith.constant 0 : index
    %c0_73 = arith.constant 0 : index
    %46 = vector.load %arg1[%c0_71, %c5, %c0_72, %c0_73] : memref<1x6x16x64xf32, #tpu.memory_space<vmem>>, vector<1x1x14x64xf32>
    %47 = vector.shape_cast %46 : vector<1x1x14x64xf32> to vector<14x64xf32>
    %c0_74 = arith.constant 0 : index
    %c5_75 = arith.constant 5 : index
    %c1_76 = arith.constant 1 : index
    %c0_77 = arith.constant 0 : index
    %48 = vector.load %arg1[%c0_74, %c5_75, %c1_76, %c0_77] : memref<1x6x16x64xf32, #tpu.memory_space<vmem>>, vector<1x1x14x64xf32>
    %49 = vector.shape_cast %48 : vector<1x1x14x64xf32> to vector<14x64xf32>
    %c0_78 = arith.constant 0 : index
    %c5_79 = arith.constant 5 : index
    %c2_80 = arith.constant 2 : index
    %c0_81 = arith.constant 0 : index
    %50 = vector.load %arg1[%c0_78, %c5_79, %c2_80, %c0_81] : memref<1x6x16x64xf32, #tpu.memory_space<vmem>>, vector<1x1x14x64xf32>
    %51 = vector.shape_cast %50 : vector<1x1x14x64xf32> to vector<14x64xf32>
    %52 = tpu.concatenate %33, %35, %37, %40, %42, %44, %47, %49, %51 in 1 : vector<14x64xf32>, vector<14x64xf32>, vector<14x64xf32>, vector<14x64xf32>, vector<14x64xf32>, vector<14x64xf32>, vector<14x64xf32>, vector<14x64xf32>, vector<14x64xf32> -> vector<14x576xf32>
    %53 = tpu.concatenate %31, %38, %45, %52 in 0 : vector<14x576xf32>, vector<14x576xf32>, vector<14x576xf32>, vector<14x576xf32> -> vector<56x576xf32>
    %cst_82 = arith.constant dense<0.000000e+00> : vector<56x128xf32>
    %54 = tpu.matmul %53, %0, %cst_82 {dimension_numbers = #tpu.dot_dimension_numbers<[1], [0], [0], [1], [0, 0, 1, 1], [], []>} : vector<56x576xf32>, vector<576x128xf32>, vector<56x128xf32> -> vector<56x128xf32>
    %cst_83 = arith.constant dense<0.000000e+00> : vector<24x128xf32>
    %55 = tpu.matmul %2, %54, %cst_83 {dimension_numbers = #tpu.dot_dimension_numbers<[1], [0], [0], [1], [0, 0, 1, 1], [], []>} : vector<24x56xf32>, vector<56x128xf32>, vector<24x128xf32> -> vector<24x128xf32>
    %cst_84 = arith.constant dense<0.000000e+00> : vector<24x128xf32>
    %56 = tpu.matmul %4, %54, %cst_84 {dimension_numbers = #tpu.dot_dimension_numbers<[1], [0], [0], [1], [0, 0, 1, 1], [], []>} : vector<24x56xf32>, vector<56x128xf32>, vector<24x128xf32> -> vector<24x128xf32>
    %57 = arith.maximumf %55, %56 : vector<24x128xf32>
    %cst_85 = arith.constant dense<0.000000e+00> : vector<24x128xf32>
    %58 = tpu.matmul %6, %54, %cst_85 {dimension_numbers = #tpu.dot_dimension_numbers<[1], [0], [0], [1], [0, 0, 1, 1], [], []>} : vector<24x56xf32>, vector<56x128xf32>, vector<24x128xf32> -> vector<24x128xf32>
    %59 = arith.maximumf %57, %58 : vector<24x128xf32>
    %cst_86 = arith.constant dense<0.000000e+00> : vector<24x384xf32>
    %60 = tpu.matmul %59, %7, %cst_86 {dimension_numbers = #tpu.dot_dimension_numbers<[1], [0], [0], [1], [0, 0, 1, 1], [], []>} : vector<24x128xf32>, vector<128x384xf32>, vector<24x384xf32> -> vector<24x384xf32>
    %61 = vector.extract_strided_slice %60 {offsets = [0, 0], sizes = [24, 128], strides = [1, 1]} : vector<24x384xf32> to vector<24x128xf32>
    %62 = vector.extract_strided_slice %60 {offsets = [0, 128], sizes = [24, 128], strides = [1, 1]} : vector<24x384xf32> to vector<24x128xf32>
    %63 = arith.maximumf %61, %62 : vector<24x128xf32>
    %64 = vector.extract_strided_slice %60 {offsets = [0, 256], sizes = [24, 128], strides = [1, 1]} : vector<24x384xf32> to vector<24x128xf32>
    %65 = arith.maximumf %63, %64 : vector<24x128xf32>
    %66 = arith.addf %65, %10 : vector<24x128xf32>
    %cst_87 = arith.constant 0.000000e+00 : f32
    %67 = vector.broadcast %cst_87 : f32 to vector<24x128xf32>
    %68 = arith.maximumf %66, %67 : vector<24x128xf32>
    %c0_88 = arith.constant 0 : index
    %c0_89 = arith.constant 0 : index
    %c0_90 = arith.constant 0 : index
    %69 = vector.load %arg6[%c0_88, %c0_89, %c0_90] : memref<1x24x128xf32, #tpu.memory_space<vmem>>, vector<1x24x128xf32>
    %70 = vector.shape_cast %69 : vector<1x24x128xf32> to vector<24x128xf32>
    %71 = vector.shape_cast %68 : vector<24x128xf32> to vector<1x24x128xf32>
    tpu.vector_store %arg6[%c0_88, %c0_89, %c0_90], %71 {strides = array<i32>} : memref<1x24x128xf32, #tpu.memory_space<vmem>>, vector<1x24x128xf32>,
    %72 = arith.addf %11, %68 : vector<24x128xf32>
    %73 = arith.mulf %68, %68 : vector<24x128xf32>
    %74 = arith.addf %12, %73 : vector<24x128xf32>
    %cst_91 = arith.constant dense<0.000000e+00> : vector<128xf32>
    %75 = vector.multi_reduction <add>, %72, %cst_91 [0] : vector<24x128xf32> to vector<128xf32>
    %76 = vector.shape_cast %75 : vector<128xf32> to vector<1x128xf32>
    %cst_92 = arith.constant dense<0.000000e+00> : vector<128xf32>
    %77 = vector.multi_reduction <add>, %74, %cst_92 [0] : vector<24x128xf32> to vector<128xf32>
    %78 = vector.shape_cast %77 : vector<128xf32> to vector<1x128xf32>
    %79 = tpu.concatenate %76, %78 in 0 : vector<1x128xf32>, vector<1x128xf32> -> vector<2x128xf32>
    %c0_93 = arith.constant 0 : index
    %c0_94 = arith.constant 0 : index
    %c0_95 = arith.constant 0 : index
    %80 = vector.load %arg7[%c0_93, %c0_94, %c0_95] : memref<1x2x128xf32, #tpu.memory_space<vmem>>, vector<1x2x128xf32>
    %81 = vector.shape_cast %80 : vector<1x2x128xf32> to vector<2x128xf32>
    %82 = vector.shape_cast %79 : vector<2x128xf32> to vector<1x2x128xf32>
    tpu.vector_store %arg7[%c0_93, %c0_94, %c0_95], %82 {strides = array<i32>} : memref<1x2x128xf32, #tpu.memory_space<vmem>>, vector<1x2x128xf32>,
    return
  }
  func.func @transform_0(%arg0: i32) -> (i32, i32, i32, i32) {
    %c0_i32 = arith.constant 0 : i32
    %c0_i32_0 = arith.constant 0 : i32
    %c0_i32_1 = arith.constant 0 : i32
    %c0_i32_2 = arith.constant 0 : i32
    return %arg0, %c0_i32, %c0_i32_0, %c0_i32_1 : i32, i32, i32, i32
  }
  func.func @transform_1(%arg0: i32) -> (i32, i32) {
    %c0_i32 = arith.constant 0 : i32
    %c0_i32_0 = arith.constant 0 : i32
    %c0_i32_1 = arith.constant 0 : i32
    return %c0_i32, %c0_i32_0 : i32, i32
  }
  func.func @transform_2(%arg0: i32) -> (i32, i32, i32) {
    %c0_i32 = arith.constant 0 : i32
    %c0_i32_0 = arith.constant 0 : i32
    %c0_i32_1 = arith.constant 0 : i32
    %c0_i32_2 = arith.constant 0 : i32
    return %c0_i32, %c0_i32_0, %c0_i32_1 : i32, i32, i32
  }
  func.func @transform_3(%arg0: i32) -> (i32, i32) {
    %c0_i32 = arith.constant 0 : i32
    %c0_i32_0 = arith.constant 0 : i32
    %c0_i32_1 = arith.constant 0 : i32
    return %c0_i32, %c0_i32_0 : i32, i32
  }
  func.func @transform_4(%arg0: i32) -> (i32, i32) {
    %c0_i32 = arith.constant 0 : i32
    %c0_i32_0 = arith.constant 0 : i32
    %c0_i32_1 = arith.constant 0 : i32
    return %c0_i32, %c0_i32_0 : i32, i32
  }
  func.func @transform_5(%arg0: i32) -> (i32, i32, i32) {
    %c0_i32 = arith.constant 0 : i32
    %c0_i32_0 = arith.constant 0 : i32
    %c0_i32_1 = arith.constant 0 : i32
    return %arg0, %c0_i32, %c0_i32_0 : i32, i32, i32
  }
  func.func @transform_6(%arg0: i32) -> (i32, i32, i32) {
    %c0_i32 = arith.constant 0 : i32
    %c0_i32_0 = arith.constant 0 : i32
    %c0_i32_1 = arith.constant 0 : i32
    return %arg0, %c0_i32, %c0_i32_0 : i32, i32, i32
  }
}

</mosaic_0001>

<llo_original>
// kernel: tpu_custom_call.1
$region0: #{tpu_custom_call.1}
  #allocation0 [shape = 'u32[]', space=smem, size = 0x4, offset = 0x4, fixed_abs, tag = 'smem constant byte address 0x4 - core index']
  #allocation1 [shape = 'u32[72,128]{1,0:T(1,128)}', space=vmem, size = 0x9000, scoped, tag = 'internal scratch']
  %s0 = inlined_call_operand.hbm [shape: f32[2,6,16,64], index: 0, kind: input, shape index: {}]
  %s1 = inlined_call_operand.hbm [shape: f32[576,128], index: 1, kind: input, shape index: {}]
  %s2 = inlined_call_operand.hbm [shape: f32[3,24,56], index: 2, kind: input, shape index: {}]
  %s3 = inlined_call_operand.hbm [shape: f32[128,384], index: 3, kind: input, shape index: {}]
  %s4 = inlined_call_operand.vmem [shape: f32[1,128], index: 4, kind: input, shape index: {}]
  %s5 = inlined_call_operand.hbm [shape: f32[2,24,128], index: 5, kind: output, shape index: {0}]
  %s6 = inlined_call_operand.hbm [shape: f32[2,2,128], index: 6, kind: output, shape index: {1}]
  %7 = xla_tuple %s5, %s6
  %s8 = sld [smem:[#allocation0]]
  $region77: #{tpu_custom_call.1} parent=0
    _
  %s10 = ssub.s32 1, %s8
  %s11 = scalar_select 0, %s10, %s8
  $region1: #{tpu_custom_call.1} parent=0
    #allocation2 [shape = 'u8[98304]{0}', space=vmem, size = 0x18000, scoped, tag = 'input window, operand 0']
    #allocation3 [shape = 's32[2]{0}', space=sflag, size = 0x8, scoped, tag = 'scoped memory for tpu_custom_call.1']
    #allocation4 [shape = 's32[2]{0}', space=sflag, size = 0x8, scoped, tag = 'scoped memory for tpu_custom_call.1']
    #allocation5 [shape = 'u8[294912]{0}', space=vmem, size = 0x48000, scoped, tag = 'input window, operand 1, single buffered']
    #allocation6 [shape = 's32[1]{0}', space=sflag, size = 0x4, scoped, tag = 'scoped memory for tpu_custom_call.1']
    #allocation7 [shape = 'u8[36864]{0}', space=vmem, size = 0x9000, scoped, tag = 'input window, operand 2, single buffered']
    #allocation8 [shape = 'u8[196608]{0}', space=vmem, size = 0x30000, scoped, tag = 'input window, operand 3, single buffered']
    #allocation9 [shape = 's32[1]{0}', space=sflag, size = 0x4, scoped, tag = 'scoped memory for tpu_custom_call.1']
    #allocation10 [shape = 'u8[24576]{0}', space=vmem, size = 0x6000, scoped, tag = 'output window, operand 0']
    #allocation11 [shape = 'u8[2048]{0}', space=vmem, size = 0x800, scoped, tag = 'output window, operand 1']
    #allocation12 [shape = 's32[2]{0}', space=sflag, size = 0x8, scoped, tag = 'scoped memory for tpu_custom_call.1']
    %12 = vsyncpa [#allocation3], 0
    %s13 = scalar_lea.sflag [#allocation3], 1
    %14 = vsyncpa %s13, 0
    %15 = vsyncpa [#allocation6], 0
    %16 = vsyncpa [#allocation9], 0
    %17 = vsyncpa [#allocation4], 0
    %s18 = scalar_lea.sflag [#allocation4], 1
    %19 = vsyncpa %s18, 0
    %20 = vsyncpa [#allocation12], 0
    %s21 = scalar_lea.sflag [#allocation12], 1
    %22 = vsyncpa %s21, 0
    loop: start=0, step=1, limit=4
    $region2: #{tpu_custom_call.1} parent=1 // loop_pre_header
      _
    $region3: #{tpu_custom_call.1} parent=1 // loop_header
      %s24 = sphi 0, %s28
      %p25 = scmp.ge.s32.totalorder %s24, 4
      %s34 = sphi 0, %s36
      %s37 = sphi 0, %s34
      %s38 = sphi 0, %s37
      %s54 = sphi 0, %s38
      %s58 = sphi 0, %s58
      %s60 = sphi 0, %s58
      %s61 = sphi 0, %s60
      %s75 = sphi 0, %s61
      %s79 = sphi 0, %s79
      %s81 = sphi 0, %s79
      %s82 = sphi 0, %s81
      %s96 = sphi 0, %s82
      %s100 = sphi 0, %s100
      %s102 = sphi 0, %s100
      %s103 = sphi 0, %s102
      %s117 = sphi 0, %s103
      %s121 = sphi 0, %s121
      %s123 = sphi 0, %s121
      %s124 = sphi 0, %s123
      %s138 = sphi 0, %s124
      %s144 = sphi 0, %s146
      %s147 = sphi 0, %s144
      %s148 = sphi 0, %s147
      %s164 = sphi 0, %s148
      %s170 = sphi 0, %s172
      %s173 = sphi 0, %s170
      %s174 = sphi 0, %s173
      %s190 = sphi 0, %s174
    $region4: #{tpu_custom_call.1} parent=1 // loop_header_branch
      %27 = sbr.rel (%p25) target = $region8
    $region5: #{tpu_custom_call.1} parent=1 // loop_body
      %s29 = ssub.s32 %s24, 1
      %s30 = ssub.s32 %s24, 2
      %s31 = sadd.s32 %s24, 1
      %s32 = ssub.s32 %s24, %s31
      %p33 = scmp.eq.s32.totalorder %s32, 0
      %s35 = sadd.s32 %s34, 1
      %s36 = scalar_select %p33, %s34, %s35
      %p39 = pneg %p33
      %p40 = scmp.eq.s32.totalorder %s24, 1
      %p41 = por %p39, %p40
      %p42 = scmp.ne.s32.totalorder %s34, %s37
      %p43 = scmp.eq.s32.totalorder %s24, 0
      %p44 = por %p42, %p43
      %p45 = scmp.ne.s32.totalorder %s34, %s37
      %p46 = scmp.eq.s32.totalorder %s29, 1
      %p47 = por %p45, %p46
      %p48 = scmp.ne.s32.totalorder %s37, %s38
      %p49 = scmp.eq.s32.totalorder %s29, 0
      %p50 = por %p48, %p49
      %p51 = scmp.ne.s32.totalorder %s37, %s38
      %p52 = scmp.eq.s32.totalorder %s30, 1
      %p53 = por %p51, %p52
      %p55 = scmp.ne.s32.totalorder %s38, %s54
      %p56 = scmp.eq.s32.totalorder %s30, 0
      %p57 = por %p55, %p56
      %s59 = sadd.s32 %s58, 1
      %p62 = scmp.eq.s32.totalorder %s24, 1
      %p63 = scmp.ne.s32.totalorder %s58, %s60
      %p64 = scmp.eq.s32.totalorder %s24, 0
      %p65 = por %p63, %p64
      %p66 = scmp.ne.s32.totalorder %s58, %s60
      %p67 = scmp.eq.s32.totalorder %s29, 1
      %p68 = por %p66, %p67
      %p69 = scmp.ne.s32.totalorder %s60, %s61
      %p70 = scmp.eq.s32.totalorder %s29, 0
      %p71 = por %p69, %p70
      %p72 = scmp.ne.s32.totalorder %s60, %s61
      %p73 = scmp.eq.s32.totalorder %s30, 1
      %p74 = por %p72, %p73
      %p76 = scmp.ne.s32.totalorder %s61, %s75
      %p77 = scmp.eq.s32.totalorder %s30, 0
      %p78 = por %p76, %p77
      %s80 = sadd.s32 %s79, 1
      %p83 = scmp.eq.s32.totalorder %s24, 1
      %p84 = scmp.ne.s32.totalorder %s79, %s81
      %p85 = scmp.eq.s32.totalorder %s24, 0
      %p86 = por %p84, %p85
      %p87 = scmp.ne.s32.totalorder %s79, %s81
      %p88 = scmp.eq.s32.totalorder %s29, 1
      %p89 = por %p87, %p88
      %p90 = scmp.ne.s32.totalorder %s81, %s82
      %p91 = scmp.eq.s32.totalorder %s29, 0
      %p92 = por %p90, %p91
      %p93 = scmp.ne.s32.totalorder %s81, %s82
      %p94 = scmp.eq.s32.totalorder %s30, 1
      %p95 = por %p93, %p94
      %p97 = scmp.ne.s32.totalorder %s82, %s96
      %p98 = scmp.eq.s32.totalorder %s30, 0
      %p99 = por %p97, %p98
      %s101 = sadd.s32 %s100, 1
      %p104 = scmp.eq.s32.totalorder %s24, 1
      %p105 = scmp.ne.s32.totalorder %s100, %s102
      %p106 = scmp.eq.s32.totalorder %s24, 0
      %p107 = por %p105, %p106
      %p108 = scmp.ne.s32.totalorder %s100, %s102
      %p109 = scmp.eq.s32.totalorder %s29, 1
      %p110 = por %p108, %p109
      %p111 = scmp.ne.s32.totalorder %s102, %s103
      %p112 = scmp.eq.s32.totalorder %s29, 0
      %p113 = por %p111, %p112
      %p114 = scmp.ne.s32.totalorder %s102, %s103
      %p115 = scmp.eq.s32.totalorder %s30, 1
      %p116 = por %p114, %p115
      %p118 = scmp.ne.s32.totalorder %s103, %s117
      %p119 = scmp.eq.s32.totalorder %s30, 0
      %p120 = por %p118, %p119
      %s122 = sadd.s32 %s121, 1
      %p125 = scmp.eq.s32.totalorder %s24, 1
      %p126 = scmp.ne.s32.totalorder %s121, %s123
      %p127 = scmp.eq.s32.totalorder %s24, 0
      %p128 = por %p126, %p127
      %p129 = scmp.ne.s32.totalorder %s121, %s123
      %p130 = scmp.eq.s32.totalorder %s29, 1
      %p131 = por %p129, %p130
      %p132 = scmp.ne.s32.totalorder %s123, %s124
      %p133 = scmp.eq.s32.totalorder %s29, 0
      %p134 = por %p132, %p133
      %p135 = scmp.ne.s32.totalorder %s123, %s124
      %p136 = scmp.eq.s32.totalorder %s30, 1
      %p137 = por %p135, %p136
      %p139 = scmp.ne.s32.totalorder %s124, %s138
      %p140 = scmp.eq.s32.totalorder %s30, 0
      %p141 = por %p139, %p140
      %s142 = ssub.s32 %s24, %s31
      %p143 = scmp.eq.s32.totalorder %s142, 0
      %s145 = sadd.s32 %s144, 1
      %s146 = scalar_select %p143, %s144, %s145
      %p149 = pneg %p143
      %p150 = scmp.eq.s32.totalorder %s24, 1
      %p151 = por %p149, %p150
      %p152 = scmp.ne.s32.totalorder %s144, %s147
      %p153 = scmp.eq.s32.totalorder %s24, 0
      %p154 = por %p152, %p153
      %p155 = scmp.ne.s32.totalorder %s144, %s147
      %p156 = scmp.eq.s32.totalorder %s29, 1
      %p157 = por %p155, %p156
      %p158 = scmp.ne.s32.totalorder %s147, %s148
      %p159 = scmp.eq.s32.totalorder %s29, 0
      %p160 = por %p158, %p159
      %p161 = scmp.ne.s32.totalorder %s147, %s148
      %p162 = scmp.eq.s32.totalorder %s30, 1
      %p163 = por %p161, %p162
      %p165 = scmp.ne.s32.totalorder %s148, %s164
      %p166 = scmp.eq.s32.totalorder %s30, 0
      %p167 = por %p165, %p166
      %s168 = ssub.s32 %s24, %s31
      %p169 = scmp.eq.s32.totalorder %s168, 0
      %s171 = sadd.s32 %s170, 1
      %s172 = scalar_select %p169, %s170, %s171
      %p175 = pneg %p169
      %p176 = scmp.eq.s32.totalorder %s24, 1
      %p177 = por %p175, %p176
      %p178 = scmp.ne.s32.totalorder %s170, %s173
      %p179 = scmp.eq.s32.totalorder %s24, 0
      %p180 = por %p178, %p179
      %p181 = scmp.ne.s32.totalorder %s170, %s173
      %p182 = scmp.eq.s32.totalorder %s29, 1
      %p183 = por %p181, %p182
      %p184 = scmp.ne.s32.totalorder %s173, %s174
      %p185 = scmp.eq.s32.totalorder %s29, 0
      %p186 = por %p184, %p185
      %p187 = scmp.ne.s32.totalorder %s173, %s174
      %p188 = scmp.eq.s32.totalorder %s30, 1
      %p189 = por %p187, %p188
      %p191 = scmp.ne.s32.totalorder %s174, %s190
      %p192 = scmp.eq.s32.totalorder %s30, 0
      %p193 = por %p191, %p192
      %p194 = scmp.le.s32.totalorder 1, %s24
      %p195 = scmp.lt.s32.totalorder %s24, 3
      %p196 = pnand %p194, %p195
      %p197 = pneg %p196
      // Predicated region
      $region9: #{tpu_custom_call.1} parent=5 // pred_check
        _
      $region10: #{tpu_custom_call.1} parent=5 // pred_check_branch
        %199 = sbr.rel (%p196) target = $region12
      $region11: #{tpu_custom_call.1} parent=5 // pred_region
        %s200 = ssub.s32 %s24, 1
        // Predicated region
        $region13: #{tpu_custom_call.1} parent=11 // pred_check
          %p201 = pneg %p71
        $region14: #{tpu_custom_call.1} parent=11 // pred_check_branch
          %203 = sbr.rel (%p201) target = $region16
        $region15: #{tpu_custom_call.1} parent=11 // pred_region
          %205 = vsyncadd [#allocation6], 0
          %s206 = sshll.u32 %s1, 4
          %s207 = int_to_ptr.hbm [resolvable:$true] %s206
          %s208 = sshll.u32 [#allocation5], 4
          %s209 = int_to_ptr.vmem [resolvable:$true] %s208
          %214 = dma.hbm_to_vmem [thread:$0]  %s207, 9216, %s209, [#allocation6], 128, 128, 8
        $region16: #{tpu_custom_call.1} parent=11 // pred_fallthru
          _
        // Predicated region
        $region17: #{tpu_custom_call.1} parent=11 // pred_check
          %p215 = pneg %p92
        $region18: #{tpu_custom_call.1} parent=11 // pred_check_branch
          %217 = sbr.rel (%p215) target = $region20
        $region19: #{tpu_custom_call.1} parent=11 // pred_region
          %219 = vsyncadd [#allocation6], 0
          %s220 = sshll.u32 %s2, 4
          %s221 = int_to_ptr.hbm [resolvable:$true] %s220
          %s222 = sshll.u32 [#allocation7], 4
          %s223 = int_to_ptr.vmem [resolvable:$true] %s222
          %228 = dma.hbm_to_vmem [thread:$0]  %s221, 1152, %s223, [#allocation6], 128, 128, 8
        $region20: #{tpu_custom_call.1} parent=11 // pred_fallthru
          _
        // Predicated region
        $region21: #{tpu_custom_call.1} parent=11 // pred_check
          %p229 = pneg %p113
        $region22: #{tpu_custom_call.1} parent=11 // pred_check_branch
          %231 = sbr.rel (%p229) target = $region24
        $region23: #{tpu_custom_call.1} parent=11 // pred_region
          %233 = vsyncadd [#allocation9], 0
          %s234 = sshll.u32 %s3, 4
          %s235 = int_to_ptr.hbm [resolvable:$true] %s234
          %s236 = sshll.u32 [#allocation8], 4
          %s237 = int_to_ptr.vmem [resolvable:$true] %s236
          %242 = dma.hbm_to_vmem [thread:$0]  %s235, 6144, %s237, [#allocation9], 384, 384, 24
        $region24: #{tpu_custom_call.1} parent=11 // pred_fallthru
          _
        // Predicated region
        $region25: #{tpu_custom_call.1} parent=11 // pred_check
          %p243 = pneg %p134
        $region26: #{tpu_custom_call.1} parent=11 // pred_check_branch
          %245 = sbr.rel (%p243) target = $region28
        $region27: #{tpu_custom_call.1} parent=11 // pred_region
          _
        $region28: #{tpu_custom_call.1} parent=11 // pred_fallthru
          _
      $region12: #{tpu_custom_call.1} parent=5 // pred_fallthru
        _
      %p246 = scmp.lt.s32.totalorder %s24, 2
      // Predicated region
      $region29: #{tpu_custom_call.1} parent=5 // pred_check
        %p247 = pneg %p246
      $region30: #{tpu_custom_call.1} parent=5 // pred_check_branch
        %249 = sbr.rel (%p247) target = $region32
      $region31: #{tpu_custom_call.1} parent=5 // pred_region
        // Predicated region
        $region33: #{tpu_custom_call.1} parent=31 // pred_check
          %p250 = pneg %p44
        $region34: #{tpu_custom_call.1} parent=31 // pred_check_branch
          %252 = sbr.rel (%p250) target = $region36
        $region35: #{tpu_custom_call.1} parent=31 // pred_region
          %s253 = sand.u32 %s34, 1
          %s254 = scalar_lea.sflag [#allocation3], %s253
          %s255 = sand.u32 %s34, 1
          %s256 = smul.addr %s255, 96
          %s257 = scalar_lea.vmem [#allocation2], %s256
          %259 = vsyncadd %s254, 0
          %s260 = smul.addr %s24, 12
          %s261 = smul.addr %s260, 8
          %s262 = scalar_lea.hbm %s0, %s261
          %s263 = sshll.u32 %s262, 4
          %s264 = int_to_ptr.hbm [resolvable:$true] %s263
          %s265 = sshll.u32 %s257, 4
          %s266 = int_to_ptr.vmem [resolvable:$true] %s265
          %271 = dma.hbm_to_vmem [thread:$0]  %s264, 1536, %s266, %s254, 128, 128, 8
        $region36: #{tpu_custom_call.1} parent=31 // pred_fallthru
          _
      $region32: #{tpu_custom_call.1} parent=5 // pred_fallthru
        _
      %p272 = scmp.le.s32.totalorder 1, %s24
      %p273 = scmp.lt.s32.totalorder %s24, 3
      %p274 = pnand %p272, %p273
      %p275 = pneg %p274
      // Predicated region
      $region37: #{tpu_custom_call.1} parent=5 // pred_check
        _
      $region38: #{tpu_custom_call.1} parent=5 // pred_check_branch
        %277 = sbr.rel (%p274) target = $region40
      $region39: #{tpu_custom_call.1} parent=5 // pred_region
        %s278 = ssub.s32 %s24, 1
        %s279 = sand.u32 %s37, 1
        %s280 = scalar_lea.sflag [#allocation3], %s279
        %s281 = sand.u32 %s37, 1
        %s282 = smul.addr %s281, 96
        %s283 = scalar_lea.vmem [#allocation2], %s282
        // Predicated region
        $region41: #{tpu_custom_call.1} parent=39 // pred_check
          %p284 = pneg %p50
        $region42: #{tpu_custom_call.1} parent=39 // pred_check_branch
          %286 = sbr.rel (%p284) target = $region44
        $region43: #{tpu_custom_call.1} parent=39 // pred_region
          %288 = dma.done %s280, 1536
        $region44: #{tpu_custom_call.1} parent=39 // pred_fallthru
          _
        // Predicated region
        $region45: #{tpu_custom_call.1} parent=39 // pred_check
          %p289 = pneg %p71
        $region46: #{tpu_custom_call.1} parent=39 // pred_check_branch
          %291 = sbr.rel (%p289) target = $region48
        $region47: #{tpu_custom_call.1} parent=39 // pred_region
          %293 = dma.done [#allocation6], 9216
        $region48: #{tpu_custom_call.1} parent=39 // pred_fallthru
          _
        // Predicated region
        $region49: #{tpu_custom_call.1} parent=39 // pred_check
          %p294 = pneg %p92
        $region50: #{tpu_custom_call.1} parent=39 // pred_check_branch
          %296 = sbr.rel (%p294) target = $region52
        $region51: #{tpu_custom_call.1} parent=39 // pred_region
          %298 = dma.done [#allocation6], 1152
        $region52: #{tpu_custom_call.1} parent=39 // pred_fallthru
          _
        // Predicated region
        $region53: #{tpu_custom_call.1} parent=39 // pred_check
          %p299 = pneg %p113
        $region54: #{tpu_custom_call.1} parent=39 // pred_check_branch
          %301 = sbr.rel (%p299) target = $region56
        $region55: #{tpu_custom_call.1} parent=39 // pred_region
          %303 = dma.done [#allocation9], 6144
        $region56: #{tpu_custom_call.1} parent=39 // pred_fallthru
          _
        %s304 = sand.u32 %s37, 1
        %s305 = scalar_lea.sflag [#allocation3], %s304
        %s306 = sand.u32 %s37, 1
        %s307 = smul.addr %s306, 96
        %s308 = scalar_lea.vmem [#allocation2], %s307
        %p309 = pneg %p50
        %p310 = pneg %p47
        %p311 = pneg %p71
        %p312 = pneg %p68
        %p313 = pneg %p92
        %p314 = pneg %p89
        %p315 = pneg %p113
        %p316 = pneg %p110
        %p317 = pneg %p134
        %p318 = pneg %p131
        %p319 = pneg %p160
        %p320 = pneg %p157
        %s321 = sand.u32 %s147, 1
        %s322 = scalar_lea.sflag [#allocation4], %s321
        %s323 = sand.u32 %s147, 1
        %s324 = smul.addr %s323, 24
        %s325 = scalar_lea.vmem [#allocation10], %s324
        %p326 = pneg %p186
        %p327 = pneg %p183
        %s328 = sand.u32 %s173, 1
        %s329 = scalar_lea.sflag [#allocation12], %s328
        %s330 = sand.u32 %s173, 1
        %s331 = smul.addr %s330, 2
        %s332 = scalar_lea.vmem [#allocation11], %s331
        %v333 = vld [vmem:[#allocation5] sm:$0xff]
        %v334 = vld [vmem:[#allocation5 + $0x8] sm:$0xff]
        %v335 = vld [vmem:[#allocation5 + $0x10] sm:$0xff]
        %v336 = vld [vmem:[#allocation5 + $0x18] sm:$0xff]
        %v337 = vld [vmem:[#allocation5 + $0x20] sm:$0xff]
        %v338 = vld [vmem:[#allocation5 + $0x28] sm:$0xff]
        %v339 = vld [vmem:[#allocation5 + $0x30] sm:$0xff]
        %v340 = vld [vmem:[#allocation5 + $0x38] sm:$0xff]
        %v341 = vld [vmem:[#allocation5 + $0x40] sm:$0xff]
        %v342 = vld [vmem:[#allocation5 + $0x48] sm:$0xff]
        %v343 = vld [vmem:[#allocation5 + $0x50] sm:$0xff]
        %v344 = vld [vmem:[#allocation5 + $0x58] sm:$0xff]
        %v345 = vld [vmem:[#allocation5 + $0x60] sm:$0xff]
        %v346 = vld [vmem:[#allocation5 + $0x68] sm:$0xff]
        %v347 = vld [vmem:[#allocation5 + $0x70] sm:$0xff]
        %v348 = vld [vmem:[#allocation5 + $0x78] sm:$0xff]
        %v349 = vld [vmem:[#allocation5 + $0x80] sm:$0xff]
        %v350 = vld [vmem:[#allocation5 + $0x88] sm:$0xff]
        %v351 = vld [vmem:[#allocation5 + $0x90] sm:$0xff]
        %v352 = vld [vmem:[#allocation5 + $0x98] sm:$0xff]
        %v353 = vld [vmem:[#allocation5 + $0xa0] sm:$0xff]
        %v354 = vld [vmem:[#allocation5 + $0xa8] sm:$0xff]
        %v355 = vld [vmem:[#allocation5 + $0xb0] sm:$0xff]
        %v356 = vld [vmem:[#allocation5 + $0xb8] sm:$0xff]
        %v357 = vld [vmem:[#allocation5 + $0xc0] sm:$0xff]
        %v358 = vld [vmem:[#allocation5 + $0xc8] sm:$0xff]
        %v359 = vld [vmem:[#allocation5 + $0xd0] sm:$0xff]
        %v360 = vld [vmem:[#allocation5 + $0xd8] sm:$0xff]
        %v361 = vld [vmem:[#allocation5 + $0xe0] sm:$0xff]
        %v362 = vld [vmem:[#allocation5 + $0xe8] sm:$0xff]
        %v363 = vld [vmem:[#allocation5 + $0xf0] sm:$0xff]
        %v364 = vld [vmem:[#allocation5 + $0xf8] sm:$0xff]
        %v365 = vld [vmem:[#allocation5 + $0x100] sm:$0xff]
        %v366 = vld [vmem:[#allocation5 + $0x108] sm:$0xff]
        %v367 = vld [vmem:[#allocation5 + $0x110] sm:$0xff]
        %v368 = vld [vmem:[#allocation5 + $0x118] sm:$0xff]
        %v369 = vld [vmem:[#allocation5 + $0x120] sm:$0xff]
        %v370 = vld [vmem:[#allocation5 + $0x128] sm:$0xff]
        %v371 = vld [vmem:[#allocation5 + $0x130] sm:$0xff]
        %v372 = vld [vmem:[#allocation5 + $0x138] sm:$0xff]
        %v373 = vld [vmem:[#allocation5 + $0x140] sm:$0xff]
        %v374 = vld [vmem:[#allocation5 + $0x148] sm:$0xff]
        %v375 = vld [vmem:[#allocation5 + $0x150] sm:$0xff]
        %v376 = vld [vmem:[#allocation5 + $0x158] sm:$0xff]
        %v377 = vld [vmem:[#allocation5 + $0x160] sm:$0xff]
        %v378 = vld [vmem:[#allocation5 + $0x168] sm:$0xff]
        %v379 = vld [vmem:[#allocation5 + $0x170] sm:$0xff]
        %v380 = vld [vmem:[#allocation5 + $0x178] sm:$0xff]
        %v381 = vld [vmem:[#allocation5 + $0x180] sm:$0xff]
        %v382 = vld [vmem:[#allocation5 + $0x188] sm:$0xff]
        %v383 = vld [vmem:[#allocation5 + $0x190] sm:$0xff]
        %v384 = vld [vmem:[#allocation5 + $0x198] sm:$0xff]
        %v385 = vld [vmem:[#allocation5 + $0x1a0] sm:$0xff]
        %v386 = vld [vmem:[#allocation5 + $0x1a8] sm:$0xff]
        %v387 = vld [vmem:[#allocation5 + $0x1b0] sm:$0xff]
        %v388 = vld [vmem:[#allocation5 + $0x1b8] sm:$0xff]
        %v389 = vld [vmem:[#allocation5 + $0x1c0] sm:$0xff]
        %v390 = vld [vmem:[#allocation5 + $0x1c8] sm:$0xff]
        %v391 = vld [vmem:[#allocation5 + $0x1d0] sm:$0xff]
        %v392 = vld [vmem:[#allocation5 + $0x1d8] sm:$0xff]
        %v393 = vld [vmem:[#allocation5 + $0x1e0] sm:$0xff]
        %v394 = vld [vmem:[#allocation5 + $0x1e8] sm:$0xff]
        %v395 = vld [vmem:[#allocation5 + $0x1f0] sm:$0xff]
        %v396 = vld [vmem:[#allocation5 + $0x1f8] sm:$0xff]
        %v397 = vld [vmem:[#allocation5 + $0x200] sm:$0xff]
        %v398 = vld [vmem:[#allocation5 + $0x208] sm:$0xff]
        %v399 = vld [vmem:[#allocation5 + $0x210] sm:$0xff]
        %v400 = vld [vmem:[#allocation5 + $0x218] sm:$0xff]
        %v401 = vld [vmem:[#allocation5 + $0x220] sm:$0xff]
        %v402 = vld [vmem:[#allocation5 + $0x228] sm:$0xff]
        %v403 = vld [vmem:[#allocation5 + $0x230] sm:$0xff]
        %v404 = vld [vmem:[#allocation5 + $0x238] sm:$0xff]
        %v405 = vld [vmem:[#allocation7] sm:$0xff]
        %v406 = vld [vmem:[#allocation7 + $0x8] sm:$0xff]
        %v407 = vld [vmem:[#allocation7 + $0x10] sm:$0xff]
        %s408 = scalar_lea.vmem [#allocation7], 24
        %v409 = vld [vmem:[%s408] sm:$0xff]
        %v410 = vld [vmem:[%s408 + $0x8] sm:$0xff]
        %v411 = vld [vmem:[%s408 + $0x10] sm:$0xff]
        %s412 = scalar_lea.vmem [#allocation7], 48
        %v413 = vld [vmem:[%s412] sm:$0xff]
        %v414 = vld [vmem:[%s412 + $0x8] sm:$0xff]
        %v415 = vld [vmem:[%s412 + $0x10] sm:$0xff]
        %v416 = vld [vmem:[#allocation8] sm:$0xff]
        %v417 = vld [vmem:[#allocation8 + $0x8] sm:$0xff]
        %v418 = vld [vmem:[#allocation8 + $0x10] sm:$0xff]
        %v419 = vld [vmem:[#allocation8 + $0x18] sm:$0xff]
        %v420 = vld [vmem:[#allocation8 + $0x20] sm:$0xff]
        %v421 = vld [vmem:[#allocation8 + $0x28] sm:$0xff]
        %v422 = vld [vmem:[#allocation8 + $0x30] sm:$0xff]
        %v423 = vld [vmem:[#allocation8 + $0x38] sm:$0xff]
        %v424 = vld [vmem:[#allocation8 + $0x40] sm:$0xff]
        %v425 = vld [vmem:[#allocation8 + $0x48] sm:$0xff]
        %v426 = vld [vmem:[#allocation8 + $0x50] sm:$0xff]
        %v427 = vld [vmem:[#allocation8 + $0x58] sm:$0xff]
        %v428 = vld [vmem:[#allocation8 + $0x60] sm:$0xff]
        %v429 = vld [vmem:[#allocation8 + $0x68] sm:$0xff]
        %v430 = vld [vmem:[#allocation8 + $0x70] sm:$0xff]
        %v431 = vld [vmem:[#allocation8 + $0x78] sm:$0xff]
        %v432 = vld [vmem:[#allocation8 + $0x80] sm:$0xff]
        %v433 = vld [vmem:[#allocation8 + $0x88] sm:$0xff]
        %v434 = vld [vmem:[#allocation8 + $0x90] sm:$0xff]
        %v435 = vld [vmem:[#allocation8 + $0x98] sm:$0xff]
        %v436 = vld [vmem:[#allocation8 + $0xa0] sm:$0xff]
        %v437 = vld [vmem:[#allocation8 + $0xa8] sm:$0xff]
        %v438 = vld [vmem:[#allocation8 + $0xb0] sm:$0xff]
        %v439 = vld [vmem:[#allocation8 + $0xb8] sm:$0xff]
        %v440 = vld [vmem:[#allocation8 + $0xc0] sm:$0xff]
        %v441 = vld [vmem:[#allocation8 + $0xc8] sm:$0xff]
        %v442 = vld [vmem:[#allocation8 + $0xd0] sm:$0xff]
        %v443 = vld [vmem:[#allocation8 + $0xd8] sm:$0xff]
        %v444 = vld [vmem:[#allocation8 + $0xe0] sm:$0xff]
        %v445 = vld [vmem:[#allocation8 + $0xe8] sm:$0xff]
        %v446 = vld [vmem:[#allocation8 + $0xf0] sm:$0xff]
        %v447 = vld [vmem:[#allocation8 + $0xf8] sm:$0xff]
        %v448 = vld [vmem:[#allocation8 + $0x100] sm:$0xff]
        %v449 = vld [vmem:[#allocation8 + $0x108] sm:$0xff]
        %v450 = vld [vmem:[#allocation8 + $0x110] sm:$0xff]
        %v451 = vld [vmem:[#allocation8 + $0x118] sm:$0xff]
        %v452 = vld [vmem:[#allocation8 + $0x120] sm:$0xff]
        %v453 = vld [vmem:[#allocation8 + $0x128] sm:$0xff]
        %v454 = vld [vmem:[#allocation8 + $0x130] sm:$0xff]
        %v455 = vld [vmem:[#allocation8 + $0x138] sm:$0xff]
        %v456 = vld [vmem:[#allocation8 + $0x140] sm:$0xff]
        %v457 = vld [vmem:[#allocation8 + $0x148] sm:$0xff]
        %v458 = vld [vmem:[#allocation8 + $0x150] sm:$0xff]
        %v459 = vld [vmem:[#allocation8 + $0x158] sm:$0xff]
        %v460 = vld [vmem:[#allocation8 + $0x160] sm:$0xff]
        %v461 = vld [vmem:[#allocation8 + $0x168] sm:$0xff]
        %v462 = vld [vmem:[#allocation8 + $0x170] sm:$0xff]
        %v463 = vld [vmem:[#allocation8 + $0x178] sm:$0xff]
        %v464 = vld [vmem:[%s4] sm:$0x1]
        %v466 = vperm.slane %v464, 0
        %v468 = vld [vmem:[%s283] sm:$0xff]
        %v469 = vld [vmem:[%s283 + $0x8] sm:$0x3f]
        %v470 = vld [vmem:[%s283 + $0x1] sm:$0xff]
        %v471 = vld [vmem:[%s283 + $0x9] sm:$0x3f]
        %v472 = vld [vmem:[%s283 + $0x2] sm:$0xff]
        %v473 = vld [vmem:[%s283 + $0xa] sm:$0x3f]
        %s474 = scalar_lea.vmem %s283, 16 [#allocation2]
        %v475 = vld [vmem:[%s474] sm:$0xff]
        %v476 = vld [vmem:[%s474 + $0x8] sm:$0x3f]
        %v477 = vld [vmem:[%s474 + $0x1] sm:$0xff]
        %v478 = vld [vmem:[%s474 + $0x9] sm:$0x3f]
        %v479 = vld [vmem:[%s474 + $0x2] sm:$0xff]
        %v480 = vld [vmem:[%s474 + $0xa] sm:$0x3f]
        %s481 = scalar_lea.vmem %s283, 32 [#allocation2]
        %v482 = vld [vmem:[%s481] sm:$0xff]
        %v483 = vld [vmem:[%s481 + $0x8] sm:$0x3f]
        %v484 = vld [vmem:[%s481 + $0x1] sm:$0xff]
        %v485 = vld [vmem:[%s481 + $0x9] sm:$0x3f]
        %v486 = vld [vmem:[%s481 + $0x2] sm:$0xff]
        %v487 = vld [vmem:[%s481 + $0xa] sm:$0x3f]
        %490 = vrot.lane.b32.xlu0 %v470, 64
        %v491 = vpop.permute.xlu0 %490
        %492 = vrot.lane.b32.xlu0 %v471, 64
        %v493 = vpop.permute.xlu0 %492
        %498 = vrot.lane.b32.xlu0 %v475, 64
        %v499 = vpop.permute.xlu0 %498
        %500 = vrot.lane.b32.xlu0 %v476, 64
        %v501 = vpop.permute.xlu0 %500
        %506 = vrot.lane.b32.xlu0 %v479, 64
        %v507 = vpop.permute.xlu0 %506
        %508 = vrot.lane.b32.xlu0 %v480, 64
        %v509 = vpop.permute.xlu0 %508
        %514 = vrot.lane.b32.xlu0 %v484, 64
        %v515 = vpop.permute.xlu0 %514
        %516 = vrot.lane.b32.xlu0 %v485, 64
        %v517 = vpop.permute.xlu0 %516
        %vm520 = vcmask 523264
        %v521 = vsel %vm520, %v468, %v491
        %v522 = vsel %vm520, %v469, %v493
        %v523 = vsel %vm520, %v472, %v499
        %v524 = vsel %vm520, %v473, %v501
        %v525 = vsel %vm520, %v477, %v507
        %v526 = vsel %vm520, %v478, %v509
        %v527 = vsel %vm520, %v482, %v515
        %v528 = vsel %vm520, %v483, %v517
        %s529 = scalar_lea.vmem %s283, 48 [#allocation2]
        %v530 = vld [vmem:[%s529] sm:$0xff]
        %v531 = vld [vmem:[%s529 + $0x8] sm:$0x3f]
        %v532 = vld [vmem:[%s529 + $0x1] sm:$0xff]
        %v533 = vld [vmem:[%s529 + $0x9] sm:$0x3f]
        %v534 = vld [vmem:[%s529 + $0x2] sm:$0xff]
        %v535 = vld [vmem:[%s529 + $0xa] sm:$0x3f]
        %538 = vrot.lane.b32.xlu0 %v477, 64
        %v539 = vpop.permute.xlu0 %538
        %540 = vrot.lane.b32.xlu0 %v478, 64
        %v541 = vpop.permute.xlu0 %540
        %546 = vrot.lane.b32.xlu0 %v482, 64
        %v547 = vpop.permute.xlu0 %546
        %548 = vrot.lane.b32.xlu0 %v483, 64
        %v549 = vpop.permute.xlu0 %548
        %554 = vrot.lane.b32.xlu0 %v486, 64
        %v555 = vpop.permute.xlu0 %554
        %556 = vrot.lane.b32.xlu0 %v487, 64
        %v557 = vpop.permute.xlu0 %556
        %562 = vrot.lane.b32.xlu0 %v532, 64
        %v563 = vpop.permute.xlu0 %562
        %564 = vrot.lane.b32.xlu0 %v533, 64
        %v565 = vpop.permute.xlu0 %564
        %v568 = vsel %vm520, %v475, %v539
        %v569 = vsel %vm520, %v476, %v541
        %v570 = vsel %vm520, %v479, %v547
        %v571 = vsel %vm520, %v480, %v549
        %v572 = vsel %vm520, %v484, %v555
        %v573 = vsel %vm520, %v485, %v557
        %v574 = vsel %vm520, %v530, %v563
        %v575 = vsel %vm520, %v531, %v565
        %s576 = scalar_lea.vmem %s283, 64 [#allocation2]
        %v577 = vld [vmem:[%s576] sm:$0xff]
        %v578 = vld [vmem:[%s576 + $0x8] sm:$0x3f]
        %v579 = vld [vmem:[%s576 + $0x1] sm:$0xff]
        %v580 = vld [vmem:[%s576 + $0x9] sm:$0x3f]
        %v581 = vld [vmem:[%s576 + $0x2] sm:$0xff]
        %v582 = vld [vmem:[%s576 + $0xa] sm:$0x3f]
        %585 = vrot.lane.b32.xlu0 %v530, 64
        %v586 = vpop.permute.xlu0 %585
        %587 = vrot.lane.b32.xlu0 %v531, 64
        %v588 = vpop.permute.xlu0 %587
        %593 = vrot.lane.b32.xlu0 %v534, 64
        %v594 = vpop.permute.xlu0 %593
        %595 = vrot.lane.b32.xlu0 %v535, 64
        %v596 = vpop.permute.xlu0 %595
        %601 = vrot.lane.b32.xlu0 %v579, 64
        %v602 = vpop.permute.xlu0 %601
        %603 = vrot.lane.b32.xlu0 %v580, 64
        %v604 = vpop.permute.xlu0 %603
        %v607 = vsel %vm520, %v486, %v586
        %v608 = vsel %vm520, %v487, %v588
        %v609 = vsel %vm520, %v532, %v594
        %v610 = vsel %vm520, %v533, %v596
        %v611 = vsel %vm520, %v577, %v602
        %v612 = vsel %vm520, %v578, %v604
        %s613 = scalar_lea.vmem %s283, 80 [#allocation2]
        %v614 = vld [vmem:[%s613] sm:$0xff]
        %v615 = vld [vmem:[%s613 + $0x8] sm:$0x3f]
        %v616 = vld [vmem:[%s613 + $0x1] sm:$0xff]
        %v617 = vld [vmem:[%s613 + $0x9] sm:$0x3f]
        %v618 = vld [vmem:[%s613 + $0x2] sm:$0xff]
        %v619 = vld [vmem:[%s613 + $0xa] sm:$0x3f]
        %622 = vrot.lane.b32.xlu0 %v577, 64
        %v623 = vpop.permute.xlu0 %622
        %624 = vrot.lane.b32.xlu0 %v578, 64
        %v625 = vpop.permute.xlu0 %624
        %630 = vrot.lane.b32.xlu0 %v581, 64
        %v631 = vpop.permute.xlu0 %630
        %632 = vrot.lane.b32.xlu0 %v582, 64
        %v633 = vpop.permute.xlu0 %632
        %638 = vrot.lane.b32.xlu0 %v616, 64
        %v639 = vpop.permute.xlu0 %638
        %640 = vrot.lane.b32.xlu0 %v617, 64
        %v641 = vpop.permute.xlu0 %640
        %v644 = vsel %vm520, %v534, %v623
        %v645 = vsel %vm520, %v535, %v625
        %v646 = vsel %vm520, %v579, %v631
        %v647 = vsel %vm520, %v580, %v633
        %v648 = vsel %vm520, %v614, %v639
        %v649 = vsel %vm520, %v615, %v641
        %vm658 = vcmask 1045504
        %v659 = vrot.slane %v568, 2
        %v660 = vrot.slane %v570, 2
        %v661 = vrot.slane %v572, 2
        %v662 = vrot.slane %v574, 2
        %v663 = vrot.slane %v534, 2
        %v664 = vrot.slane %v569, 2
        %v665 = vsel %vm658, %v659, %v664
        %v666 = vrot.slane %v571, 2
        %v667 = vsel %vm658, %v660, %v666
        %v668 = vrot.slane %v573, 2
        %v669 = vsel %vm658, %v661, %v668
        %v670 = vrot.slane %v575, 2
        %v671 = vsel %vm658, %v662, %v670
        %v672 = vrot.slane %v535, 2
        %v673 = vsel %vm658, %v663, %v672
        %vm696 = vcmask 1043456
        %v697 = vrot.slane %v527, 4
        %v698 = vrot.slane %v607, 4
        %v699 = vrot.slane %v609, 4
        %v700 = vrot.slane %v611, 4
        %v701 = vrot.slane %v581, 4
        %v702 = vrot.slane %v528, 4
        %v703 = vsel %vm696, %v697, %v702
        %v704 = vrot.slane %v608, 4
        %v705 = vsel %vm696, %v698, %v704
        %v706 = vrot.slane %v610, 4
        %v707 = vsel %vm696, %v699, %v706
        %v708 = vrot.slane %v612, 4
        %v709 = vsel %vm696, %v700, %v708
        %v710 = vrot.slane %v582, 4
        %v711 = vsel %vm696, %v701, %v710
        %vm734 = vcmask 1041408
        %v735 = vrot.slane %v574, 6
        %v736 = vrot.slane %v644, 6
        %v737 = vrot.slane %v646, 6
        %v738 = vrot.slane %v648, 6
        %v739 = vrot.slane %v618, 6
        %v740 = vrot.slane %v575, 6
        %v741 = vsel %vm734, %v735, %v740
        %v742 = vrot.slane %v645, 6
        %v743 = vsel %vm734, %v736, %v742
        %v744 = vrot.slane %v647, 6
        %v745 = vsel %vm734, %v737, %v744
        %v746 = vrot.slane %v649, 6
        %v747 = vsel %vm734, %v738, %v746
        %v748 = vrot.slane %v619, 6
        %v749 = vsel %vm734, %v739, %v748
        %v759 = vsel %vm658, %v522, %v659
        %v760 = vsel %vm658, %v524, %v660
        %v761 = vsel %vm658, %v526, %v661
        %v762 = vsel %vm658, %v528, %v662
        %v763 = vsel %vm658, %v487, %v663
        %v764 = vsel %vm696, %v664, %v697
        %v765 = vsel %vm696, %v666, %v698
        %v766 = vsel %vm696, %v668, %v699
        %v767 = vsel %vm696, %v670, %v700
        %v768 = vsel %vm696, %v672, %v701
        %v769 = vsel %vm734, %v702, %v735
        %v770 = vsel %vm734, %v704, %v736
        %v771 = vsel %vm734, %v706, %v737
        %v772 = vsel %vm734, %v708, %v738
        %v773 = vsel %vm734, %v710, %v739
        %v774 = vsel %vm520, %v486, 0
        %v777 = vsel %vm520, %v763, 0
        %v779 = vsel %vm520, %v673, 0
        %v782 = vsel %vm520, %v768, 0
        %v784 = vsel %vm520, %v711, 0
        %v787 = vsel %vm520, %v773, 0
        %v789 = vsel %vm520, %v749, 0
        %791 = vmatpush.msra.mxu0 %v348
        %792 = vmatpush.msra.mxu0 %v347
        %793 = vmatpush.msra.mxu0 %v346
        %794 = vmatpush.msra.mxu0 %v345
        %795 = vmatpush.msra.mxu0 %v344
        %796 = vmatpush.msra.mxu0 %v343
        %797 = vmatpush.msra.mxu0 %v342
        %798 = vmatpush.msra.mxu0 %v341
        %799 = vmatpush.msra.mxu0 %v340
        %800 = vmatpush.msra.mxu0 %v339
        %801 = vmatpush.msra.mxu0 %v338
        %802 = vmatpush.msra.mxu0 %v337
        %803 = vmatpush.msra.mxu0 %v336
        %804 = vmatpush.msra.mxu0 %v335
        %805 = vmatpush.msra.mxu0 %v334
        %806 = vmatpush.msra.mxu0 %v333
        %807 = vmatmul.f32.gmra.mxu0 %v521
        %v808 = vpop.f32.mrf.mxu0
        %v809 = vadd.f32 0.0, %v808
        %810 = vmatmul.f32.gmra.mxu0 %v759
        %v811 = vpop.f32.mrf.mxu0
        %v812 = vadd.f32 0.0, %v811
        %813 = vmatmul.f32.gmra.mxu0 %v665
        %v814 = vpop.f32.mrf.mxu0
        %v815 = vadd.f32 0.0, %v814
        %816 = vmatmul.f32.gmra.mxu0 %v764
        %v817 = vpop.f32.mrf.mxu0
        %v818 = vadd.f32 0.0, %v817
        %819 = vmatmul.f32.gmra.mxu0 %v703
        %v820 = vpop.f32.mrf.mxu0
        %v821 = vadd.f32 0.0, %v820
        %822 = vmatmul.f32.gmra.mxu0 %v769
        %v823 = vpop.f32.mrf.mxu0
        %v824 = vadd.f32 0.0, %v823
        %825 = vmatmul.f32.gmra.mxu0 %v741
        %v826 = vpop.f32.mrf.mxu0
        %v827 = vadd.f32 0.0, %v826
        %828 = vdwg.mxu0
        %829 = vmatpush.msra.mxu0 %v364
        %830 = vmatpush.msra.mxu0 %v363
        %831 = vmatpush.msra.mxu0 %v362
        %832 = vmatpush.msra.mxu0 %v361
        %833 = vmatpush.msra.mxu0 %v360
        %834 = vmatpush.msra.mxu0 %v359
        %835 = vmatpush.msra.mxu0 %v358
        %836 = vmatpush.msra.mxu0 %v357
        %837 = vmatpush.msra.mxu0 %v356
        %838 = vmatpush.msra.mxu0 %v355
        %839 = vmatpush.msra.mxu0 %v354
        %840 = vmatpush.msra.mxu0 %v353
        %841 = vmatpush.msra.mxu0 %v352
        %842 = vmatpush.msra.mxu0 %v351
        %843 = vmatpush.msra.mxu0 %v350
        %844 = vmatpush.msra.mxu0 %v349
        %845 = vmatmul.f32.gmra.mxu0 %v523
        %v846 = vpop.f32.mrf.mxu0
        %v847 = vadd.f32 %v809, %v846
        %848 = vmatmul.f32.gmra.mxu0 %v760
        %v849 = vpop.f32.mrf.mxu0
        %v850 = vadd.f32 %v812, %v849
        %851 = vmatmul.f32.gmra.mxu0 %v667
        %v852 = vpop.f32.mrf.mxu0
        %v853 = vadd.f32 %v815, %v852
        %854 = vmatmul.f32.gmra.mxu0 %v765
        %v855 = vpop.f32.mrf.mxu0
        %v856 = vadd.f32 %v818, %v855
        %857 = vmatmul.f32.gmra.mxu0 %v705
        %v858 = vpop.f32.mrf.mxu0
        %v859 = vadd.f32 %v821, %v858
        %860 = vmatmul.f32.gmra.mxu0 %v770
        %v861 = vpop.f32.mrf.mxu0
        %v862 = vadd.f32 %v824, %v861
        %863 = vmatmul.f32.gmra.mxu0 %v743
        %v864 = vpop.f32.mrf.mxu0
        %v865 = vadd.f32 %v827, %v864
        %866 = vdwg.mxu0
        %867 = vmatpush.msra.mxu0 %v380
        %868 = vmatpush.msra.mxu0 %v379
        %869 = vmatpush.msra.mxu0 %v378
        %870 = vmatpush.msra.mxu0 %v377
        %871 = vmatpush.msra.mxu0 %v376
        %872 = vmatpush.msra.mxu0 %v375
        %873 = vmatpush.msra.mxu0 %v374
        %874 = vmatpush.msra.mxu0 %v373
        %875 = vmatpush.msra.mxu0 %v372
        %876 = vmatpush.msra.mxu0 %v371
        %877 = vmatpush.msra.mxu0 %v370
        %878 = vmatpush.msra.mxu0 %v369
        %879 = vmatpush.msra.mxu0 %v368
        %880 = vmatpush.msra.mxu0 %v367
        %881 = vmatpush.msra.mxu0 %v366
        %882 = vmatpush.msra.mxu0 %v365
        %883 = vmatmul.f32.gmra.mxu0 %v525
        %v884 = vpop.f32.mrf.mxu0
        %v885 = vadd.f32 %v847, %v884
        %886 = vmatmul.f32.gmra.mxu0 %v761
        %v887 = vpop.f32.mrf.mxu0
        %v888 = vadd.f32 %v850, %v887
        %889 = vmatmul.f32.gmra.mxu0 %v669
        %v890 = vpop.f32.mrf.mxu0
        %v891 = vadd.f32 %v853, %v890
        %892 = vmatmul.f32.gmra.mxu0 %v766
        %v893 = vpop.f32.mrf.mxu0
        %v894 = vadd.f32 %v856, %v893
        %895 = vmatmul.f32.gmra.mxu0 %v707
        %v896 = vpop.f32.mrf.mxu0
        %v897 = vadd.f32 %v859, %v896
        %898 = vmatmul.f32.gmra.mxu0 %v771
        %v899 = vpop.f32.mrf.mxu0
        %v900 = vadd.f32 %v862, %v899
        %901 = vmatmul.f32.gmra.mxu0 %v745
        %v902 = vpop.f32.mrf.mxu0
        %v903 = vadd.f32 %v865, %v902
        %904 = vdwg.mxu0
        %905 = vmatpush.msra.mxu0 %v396
        %906 = vmatpush.msra.mxu0 %v395
        %907 = vmatpush.msra.mxu0 %v394
        %908 = vmatpush.msra.mxu0 %v393
        %909 = vmatpush.msra.mxu0 %v392
        %910 = vmatpush.msra.mxu0 %v391
        %911 = vmatpush.msra.mxu0 %v390
        %912 = vmatpush.msra.mxu0 %v389
        %913 = vmatpush.msra.mxu0 %v388
        %914 = vmatpush.msra.mxu0 %v387
        %915 = vmatpush.msra.mxu0 %v386
        %916 = vmatpush.msra.mxu0 %v385
        %917 = vmatpush.msra.mxu0 %v384
        %918 = vmatpush.msra.mxu0 %v383
        %919 = vmatpush.msra.mxu0 %v382
        %920 = vmatpush.msra.mxu0 %v381
        %921 = vmatmul.f32.gmra.mxu0 %v527
        %v922 = vpop.f32.mrf.mxu0
        %v923 = vadd.f32 %v885, %v922
        %924 = vmatmul.f32.gmra.mxu0 %v762
        %v925 = vpop.f32.mrf.mxu0
        %v926 = vadd.f32 %v888, %v925
        %927 = vmatmul.f32.gmra.mxu0 %v671
        %v928 = vpop.f32.mrf.mxu0
        %v929 = vadd.f32 %v891, %v928
        %930 = vmatmul.f32.gmra.mxu0 %v767
        %v931 = vpop.f32.mrf.mxu0
        %v932 = vadd.f32 %v894, %v931
        %933 = vmatmul.f32.gmra.mxu0 %v709
        %v934 = vpop.f32.mrf.mxu0
        %v935 = vadd.f32 %v897, %v934
        %936 = vmatmul.f32.gmra.mxu0 %v772
        %v937 = vpop.f32.mrf.mxu0
        %v938 = vadd.f32 %v900, %v937
        %939 = vmatmul.f32.gmra.mxu0 %v747
        %v940 = vpop.f32.mrf.mxu0
        %v941 = vadd.f32 %v903, %v940
        %942 = vdwg.mxu0
        %943 = vmatpush.msra.mxu0 0.0
        %944 = vmatpush.msra.mxu0 0.0
        %945 = vmatpush.msra.mxu0 0.0
        %946 = vmatpush.msra.mxu0 0.0
        %947 = vmatpush.msra.mxu0 0.0
        %948 = vmatpush.msra.mxu0 0.0
        %949 = vmatpush.msra.mxu0 0.0
        %950 = vmatpush.msra.mxu0 0.0
        %951 = vmatpush.msra.mxu0 %v404
        %952 = vmatpush.msra.mxu0 %v403
        %953 = vmatpush.msra.mxu0 %v402
        %954 = vmatpush.msra.mxu0 %v401
        %955 = vmatpush.msra.mxu0 %v400
        %956 = vmatpush.msra.mxu0 %v399
        %957 = vmatpush.msra.mxu0 %v398
        %958 = vmatpush.msra.mxu0 %v397
        %959 = vmatmul.f32.gmra.mxu0 %v774
        %v960 = vpop.f32.mrf.mxu0
        %v961 = vadd.f32 %v923, %v960
        %962 = vmatmul.f32.gmra.mxu0 %v777
        %v963 = vpop.f32.mrf.mxu0
        %v964 = vadd.f32 %v926, %v963
        %965 = vmatmul.f32.gmra.mxu0 %v779
        %v966 = vpop.f32.mrf.mxu0
        %v967 = vadd.f32 %v929, %v966
        %968 = vmatmul.f32.gmra.mxu0 %v782
        %v969 = vpop.f32.mrf.mxu0
        %v970 = vadd.f32 %v932, %v969
        %971 = vmatmul.f32.gmra.mxu0 %v784
        %v972 = vpop.f32.mrf.mxu0
        %v973 = vadd.f32 %v935, %v972
        %974 = vmatmul.f32.gmra.mxu0 %v787
        %v975 = vpop.f32.mrf.mxu0
        %v976 = vadd.f32 %v938, %v975
        %977 = vmatmul.f32.gmra.mxu0 %v789
        %v978 = vpop.f32.mrf.mxu0
        %v979 = vadd.f32 %v941, %v978
        %980 = vdwg.mxu0
        %vm981 = vcmask 457728
        %v983 = vsel %vm981, %v405, 0
        %v986 = vsel %vm981, %v406, 0
        %v989 = vsel %vm981, %v407, 0
        %991 = vmatpush.msra.mxu0 0.0
        %992 = vmatpush.msra.mxu0 0.0
        %993 = vmatpush.msra.mxu0 0.0
        %994 = vmatpush.msra.mxu0 0.0
        %995 = vmatpush.msra.mxu0 0.0
        %996 = vmatpush.msra.mxu0 0.0
        %997 = vmatpush.msra.mxu0 0.0
        %998 = vmatpush.msra.mxu0 0.0
        %999 = vmatpush.msra.mxu0 0.0
        %1000 = vmatpush.msra.mxu0 %v979
        %1001 = vmatpush.msra.mxu0 %v976
        %1002 = vmatpush.msra.mxu0 %v973
        %1003 = vmatpush.msra.mxu0 %v970
        %1004 = vmatpush.msra.mxu0 %v967
        %1005 = vmatpush.msra.mxu0 %v964
        %1006 = vmatpush.msra.mxu0 %v961
        %1007 = vmatmul.f32.gmra.mxu0 %v983
        %v1008 = vpop.f32.mrf.mxu0
        %v1009 = vadd.f32 0.0, %v1008
        %1010 = vmatmul.f32.gmra.mxu0 %v986
        %v1011 = vpop.f32.mrf.mxu0
        %v1012 = vadd.f32 0.0, %v1011
        %1013 = vmatmul.f32.gmra.mxu0 %v989
        %v1014 = vpop.f32.mrf.mxu0
        %v1015 = vadd.f32 0.0, %v1014
        %1016 = vdwg.mxu0
        %v1018 = vsel %vm981, %v409, 0
        %v1021 = vsel %vm981, %v410, 0
        %v1024 = vsel %vm981, %v411, 0
        %1026 = vmatpush.msra.mxu0 0.0
        %1027 = vmatpush.msra.mxu0 0.0
        %1028 = vmatpush.msra.mxu0 0.0
        %1029 = vmatpush.msra.mxu0 0.0
        %1030 = vmatpush.msra.mxu0 0.0
        %1031 = vmatpush.msra.mxu0 0.0
        %1032 = vmatpush.msra.mxu0 0.0
        %1033 = vmatpush.msra.mxu0 0.0
        %1034 = vmatpush.msra.mxu0 0.0
        %1035 = vmatpush.msra.mxu0 %v979
        %1036 = vmatpush.msra.mxu0 %v976
        %1037 = vmatpush.msra.mxu0 %v973
        %1038 = vmatpush.msra.mxu0 %v970
        %1039 = vmatpush.msra.mxu0 %v967
        %1040 = vmatpush.msra.mxu0 %v964
        %1041 = vmatpush.msra.mxu0 %v961
        %1042 = vmatmul.f32.gmra.mxu0 %v1018
        %v1043 = vpop.f32.mrf.mxu0
        %v1044 = vadd.f32 0.0, %v1043
        %1045 = vmatmul.f32.gmra.mxu0 %v1021
        %v1046 = vpop.f32.mrf.mxu0
        %v1047 = vadd.f32 0.0, %v1046
        %1048 = vmatmul.f32.gmra.mxu0 %v1024
        %v1049 = vpop.f32.mrf.mxu0
        %v1050 = vadd.f32 0.0, %v1049
        %1051 = vdwg.mxu0
        %v1052 = vmax.f32 %v1009, %v1044
        %v1053 = vmax.f32 %v1012, %v1047
        %v1054 = vmax.f32 %v1015, %v1050
        %v1056 = vsel %vm981, %v413, 0
        %v1059 = vsel %vm981, %v414, 0
        %v1062 = vsel %vm981, %v415, 0
        %1064 = vmatpush.msra.mxu0 0.0
        %1065 = vmatpush.msra.mxu0 0.0
        %1066 = vmatpush.msra.mxu0 0.0
        %1067 = vmatpush.msra.mxu0 0.0
        %1068 = vmatpush.msra.mxu0 0.0
        %1069 = vmatpush.msra.mxu0 0.0
        %1070 = vmatpush.msra.mxu0 0.0
        %1071 = vmatpush.msra.mxu0 0.0
        %1072 = vmatpush.msra.mxu0 0.0
        %1073 = vmatpush.msra.mxu0 %v979
        %1074 = vmatpush.msra.mxu0 %v976
        %1075 = vmatpush.msra.mxu0 %v973
        %1076 = vmatpush.msra.mxu0 %v970
        %1077 = vmatpush.msra.mxu0 %v967
        %1078 = vmatpush.msra.mxu0 %v964
        %1079 = vmatpush.msra.mxu0 %v961
        %1080 = vmatmul.f32.gmra.mxu0 %v1056
        %v1081 = vpop.f32.mrf.mxu0
        %v1082 = vadd.f32 0.0, %v1081
        %1083 = vmatmul.f32.gmra.mxu0 %v1059
        %v1084 = vpop.f32.mrf.mxu0
        %v1085 = vadd.f32 0.0, %v1084
        %1086 = vmatmul.f32.gmra.mxu0 %v1062
        %v1087 = vpop.f32.mrf.mxu0
        %v1088 = vadd.f32 0.0, %v1087
        %1089 = vdwg.mxu0
        %v1090 = vmax.f32 %v1052, %v1082
        %v1091 = vmax.f32 %v1053, %v1085
        %v1092 = vmax.f32 %v1054, %v1088
        %1093 = vmatpush.msra.mxu0 %v461
        %1094 = vmatpush.msra.mxu0 %v458
        %1095 = vmatpush.msra.mxu0 %v455
        %1096 = vmatpush.msra.mxu0 %v452
        %1097 = vmatpush.msra.mxu0 %v449
        %1098 = vmatpush.msra.mxu0 %v446
        %1099 = vmatpush.msra.mxu0 %v443
        %1100 = vmatpush.msra.mxu0 %v440
        %1101 = vmatpush.msra.mxu0 %v437
        %1102 = vmatpush.msra.mxu0 %v434
        %1103 = vmatpush.msra.mxu0 %v431
        %1104 = vmatpush.msra.mxu0 %v428
        %1105 = vmatpush.msra.mxu0 %v425
        %1106 = vmatpush.msra.mxu0 %v422
        %1107 = vmatpush.msra.mxu0 %v419
        %1108 = vmatpush.msra.mxu0 %v416
        %1109 = vmatmul.f32.gmra.mxu0 %v1090
        %v1110 = vpop.f32.mrf.mxu0
        %v1111 = vadd.f32 0.0, %v1110
        %1112 = vmatmul.f32.gmra.mxu0 %v1091
        %v1113 = vpop.f32.mrf.mxu0
        %v1114 = vadd.f32 0.0, %v1113
        %1115 = vmatmul.f32.gmra.mxu0 %v1092
        %v1116 = vpop.f32.mrf.mxu0
        %v1117 = vadd.f32 0.0, %v1116
        %1118 = vdwg.mxu0
        %1119 = vmatpush.msra.mxu0 %v462
        %1120 = vmatpush.msra.mxu0 %v459
        %1121 = vmatpush.msra.mxu0 %v456
        %1122 = vmatpush.msra.mxu0 %v453
        %1123 = vmatpush.msra.mxu0 %v450
        %1124 = vmatpush.msra.mxu0 %v447
        %1125 = vmatpush.msra.mxu0 %v444
        %1126 = vmatpush.msra.mxu0 %v441
        %1127 = vmatpush.msra.mxu0 %v438
        %1128 = vmatpush.msra.mxu0 %v435
        %1129 = vmatpush.msra.mxu0 %v432
        %1130 = vmatpush.msra.mxu0 %v429
        %1131 = vmatpush.msra.mxu0 %v426
        %1132 = vmatpush.msra.mxu0 %v423
        %1133 = vmatpush.msra.mxu0 %v420
        %1134 = vmatpush.msra.mxu0 %v417
        %1135 = vmatmul.f32.gmra.mxu0 %v1090
        %v1136 = vpop.f32.mrf.mxu0
        %v1137 = vadd.f32 0.0, %v1136
        %1138 = vmatmul.f32.gmra.mxu0 %v1091
        %v1139 = vpop.f32.mrf.mxu0
        %v1140 = vadd.f32 0.0, %v1139
        %1141 = vmatmul.f32.gmra.mxu0 %v1092
        %v1142 = vpop.f32.mrf.mxu0
        %v1143 = vadd.f32 0.0, %v1142
        %1144 = vdwg.mxu0
        %1145 = vmatpush.msra.mxu0 %v463
        %1146 = vmatpush.msra.mxu0 %v460
        %1147 = vmatpush.msra.mxu0 %v457
        %1148 = vmatpush.msra.mxu0 %v454
        %1149 = vmatpush.msra.mxu0 %v451
        %1150 = vmatpush.msra.mxu0 %v448
        %1151 = vmatpush.msra.mxu0 %v445
        %1152 = vmatpush.msra.mxu0 %v442
        %1153 = vmatpush.msra.mxu0 %v439
        %1154 = vmatpush.msra.mxu0 %v436
        %1155 = vmatpush.msra.mxu0 %v433
        %1156 = vmatpush.msra.mxu0 %v430
        %1157 = vmatpush.msra.mxu0 %v427
        %1158 = vmatpush.msra.mxu0 %v424
        %1159 = vmatpush.msra.mxu0 %v421
        %1160 = vmatpush.msra.mxu0 %v418
        %1161 = vmatmul.f32.gmra.mxu0 %v1090
        %v1162 = vpop.f32.mrf.mxu0
        %v1163 = vadd.f32 0.0, %v1162
        %1164 = vmatmul.f32.gmra.mxu0 %v1091
        %v1165 = vpop.f32.mrf.mxu0
        %v1166 = vadd.f32 0.0, %v1165
        %1167 = vmatmul.f32.gmra.mxu0 %v1092
        %v1168 = vpop.f32.mrf.mxu0
        %v1169 = vadd.f32 0.0, %v1168
        %1170 = vdwg.mxu0
        %v1171 = vmax.f32 %v1111, %v1137
        %v1172 = vmax.f32 %v1114, %v1140
        %v1173 = vmax.f32 %v1117, %v1143
        %v1174 = vmax.f32 %v1171, %v1163
        %v1175 = vmax.f32 %v1172, %v1166
        %v1176 = vmax.f32 %v1173, %v1169
        %v1177 = vadd.f32 %v1174, %v466
        %v1178 = vadd.f32 %v1175, %v466
        %v1179 = vadd.f32 %v1176, %v466
        %v1180 = vmax.f32 %v1177, 0.0
        %v1181 = vmax.f32 %v1178, 0.0
        %v1182 = vmax.f32 %v1179, 0.0
        %1183 = vst [vmem:[%s325] sm:$0xff] %v1180
        %1184 = vst [vmem:[%s325 + $0x8] sm:$0xff] %v1181
        %1185 = vst [vmem:[%s325 + $0x10] sm:$0xff] %v1182
        %v1186 = vadd.f32 %v1180, 0.0
        %v1187 = vadd.f32 %v1181, 0.0
        %v1188 = vadd.f32 %v1182, 0.0
        %v1189 = vmul.f32 %v1180, %v1180
        %v1190 = vmul.f32 %v1181, %v1181
        %v1191 = vmul.f32 %v1182, %v1182
        %v1192 = vadd.f32 %v1189, 0.0
        %v1193 = vadd.f32 %v1190, 0.0
        %v1194 = vadd.f32 %v1191, 0.0
        %v1195 = vadd.f32 %v1186, %v1187
        %v1196 = vadd.f32 %v1195, %v1188
        %v1197 = vrot.slane %v1196, 4
        %v1198 = vadd.f32 %v1196, %v1197
        %v1199 = vrot.slane %v1198, 2
        %v1200 = vadd.f32 %v1198, %v1199
        %v1201 = vrot.slane %v1200, 1
        %v1202 = vadd.f32 %v1200, %v1201
        %v1203 = vadd.f32 %v1192, %v1193
        %v1204 = vadd.f32 %v1203, %v1194
        %v1205 = vrot.slane %v1204, 4
        %v1206 = vadd.f32 %v1204, %v1205
        %v1207 = vrot.slane %v1206, 2
        %v1208 = vadd.f32 %v1206, %v1207
        %v1209 = vrot.slane %v1208, 1
        %v1210 = vadd.f32 %v1208, %v1209
        %vm1211 = vcmask 1040384
        %v1212 = vsel %vm1211, %v1202, %v1210
        %1213 = vst [vmem:[%s332] sm:$0x3] %v1212
        %s1214 = sand.u32 %s147, 1
        %s1215 = scalar_lea.sflag [#allocation4], %s1214
        %s1216 = sand.u32 %s147, 1
        %s1217 = smul.addr %s1216, 24
        %s1218 = scalar_lea.vmem [#allocation10], %s1217
        %s1219 = sand.u32 %s173, 1
        %s1220 = scalar_lea.sflag [#allocation12], %s1219
        %s1221 = sand.u32 %s173, 1
        %s1222 = smul.addr %s1221, 2
        %s1223 = scalar_lea.vmem [#allocation11], %s1222
        // Predicated region
        $region57: #{tpu_custom_call.1} parent=39 // pred_check
          %p1224 = pneg %p157
        $region58: #{tpu_custom_call.1} parent=39 // pred_check_branch
          %1226 = sbr.rel (%p1224) target = $region60
        $region59: #{tpu_custom_call.1} parent=39 // pred_region
          %1228 = vsyncadd %s1215, 0
          %s1229 = smul.addr %s29, 3
          %s1230 = smul.addr %s1229, 8
          %s1231 = scalar_lea.hbm %s5, %s1230
          %s1232 = sshll.u32 %s1218, 4
          %s1233 = int_to_ptr.vmem [resolvable:$true] %s1232
          %s1234 = sshll.u32 %s1231, 4
          %s1235 = int_to_ptr.hbm [resolvable:$true] %s1234
          %1240 = dma.vmem_to_hbm [thread:$0]  %s1233, 384, %s1235, %s1215, 128, 128, 8
        $region60: #{tpu_custom_call.1} parent=39 // pred_fallthru
          _
        // Predicated region
        $region61: #{tpu_custom_call.1} parent=39 // pred_check
          %p1241 = pneg %p183
        $region62: #{tpu_custom_call.1} parent=39 // pred_check_branch
          %1243 = sbr.rel (%p1241) target = $region64
        $region63: #{tpu_custom_call.1} parent=39 // pred_region
          %1245 = vsyncadd %s1220, 0
          %s1246 = smul.addr %s29, 2
          %s1247 = scalar_lea.hbm %s6, %s1246
          %s1249 = sshll.u32 %s1223, 4
          %s1250 = int_to_ptr.vmem [resolvable:$true] %s1249
          %s1251 = sshll.u32 %s1247, 4
          %s1252 = int_to_ptr.hbm [resolvable:$true] %s1251
          %1254 = dma.vmem_to_hbm [thread:$0]  %s1250, 32, %s1252, %s1220
        $region64: #{tpu_custom_call.1} parent=39 // pred_fallthru
          _
      $region40: #{tpu_custom_call.1} parent=5 // pred_fallthru
        _
      %p1255 = scmp.le.s32.totalorder 2, %s24
      // Predicated region
      $region65: #{tpu_custom_call.1} parent=5 // pred_check
        %p1256 = pneg %p1255
      $region66: #{tpu_custom_call.1} parent=5 // pred_check_branch
        %1258 = sbr.rel (%p1256) target = $region68
      $region67: #{tpu_custom_call.1} parent=5 // pred_region
        %s1259 = ssub.s32 %s24, 2
        // Predicated region
        $region69: #{tpu_custom_call.1} parent=67 // pred_check
          %p1260 = pneg %p163
        $region70: #{tpu_custom_call.1} parent=67 // pred_check_branch
          %1262 = sbr.rel (%p1260) target = $region72
        $region71: #{tpu_custom_call.1} parent=67 // pred_region
          %s1263 = sand.u32 %s148, 1
          %s1264 = scalar_lea.sflag [#allocation4], %s1263
          %s1265 = sand.u32 %s148, 1
          %s1266 = smul.addr %s1265, 24
          %s1267 = scalar_lea.vmem [#allocation10], %s1266
          %1269 = dma.done %s1264, 384
        $region72: #{tpu_custom_call.1} parent=67 // pred_fallthru
          _
        // Predicated region
        $region73: #{tpu_custom_call.1} parent=67 // pred_check
          %p1270 = pneg %p189
        $region74: #{tpu_custom_call.1} parent=67 // pred_check_branch
          %1272 = sbr.rel (%p1270) target = $region76
        $region75: #{tpu_custom_call.1} parent=67 // pred_region
          %s1273 = sand.u32 %s174, 1
          %s1274 = scalar_lea.sflag [#allocation12], %s1273
          %s1275 = sand.u32 %s174, 1
          %s1276 = smul.addr %s1275, 2
          %s1277 = scalar_lea.vmem [#allocation11], %s1276
          %1279 = dma.done %s1274, 32
        $region76: #{tpu_custom_call.1} parent=67 // pred_fallthru
          _
      $region68: #{tpu_custom_call.1} parent=5 // pred_fallthru
        _
    $region6: #{tpu_custom_call.1} parent=1 // loop_footer
      %s28 = sadd.s32 1, %s24
    $region7: #{tpu_custom_call.1} parent=1 // loop_footer_branch
      %23 = sbr.rel target = $region3
    $region8: #{tpu_custom_call.1} parent=1 // loop_exit
      _
    %1280 = vsyncpa [#allocation3], 1
    %s1281 = scalar_lea.sflag [#allocation3], 1
    %1282 = vsyncpa %s1281, 1
    %1283 = vsyncpa [#allocation6], 1
    %1284 = vsyncpa [#allocation9], 1
    %1285 = vsyncpa [#allocation4], 1
    %s1286 = scalar_lea.sflag [#allocation4], 1
    %1287 = vsyncpa %s1286, 1
    %1288 = vsyncpa [#allocation12], 1
    %s1289 = scalar_lea.sflag [#allocation12], 1
    %1290 = vsyncpa %s1289, 1

</llo_original>
